<compile_context>
chip_gen: v7x
topology: tpu7x:2x2x1
jax: 0.10.0
libtpu: 0.0.40
codegen_flags: <defaults>
</compile_context>

<pallas_src>
import functools

import jax
import jax.numpy as jnp
from jax.experimental import pallas as pl
from jax.experimental.pallas import tpu as pltpu


def _cross_attn_kernel(q_ref, k_ref, v_ref,
                       wqt_ref, wkt_ref, wvt_ref,
                       bq_ref, bk_ref, bv_ref,
                       wot_ref, bo_ref,
                       gamma_ref, beta_ref,
                       o_ref, acc_ref, *, ln_eps):
    h = pl.program_id(1)
    nb, L, E = q_ref.shape
    S = k_ref.shape[1]

    # Flatten (nb, L/S, E) -> (rows, E); sublane-aligned so this is cheap.
    x_q = q_ref[...].reshape(nb * L, E)            # f32
    x_k = k_ref[...].reshape(nb * S, E)
    x_v = v_ref[...].reshape(nb * S, E)

    @pl.when(h == 0)
    def _init():
        # residual + out-projection bias, accumulated in f32
        acc_ref[...] = x_q.astype(jnp.float32) + bo_ref[...]

    # --- this head's in-projection (bf16 MXU operands, f32 accumulation) ---
    q_h = jnp.dot(x_q.astype(jnp.bfloat16), wqt_ref[...],
                  preferred_element_type=jnp.float32) + bq_ref[...]   # (nb*L, Dh)
    k_h = jnp.dot(x_k.astype(jnp.bfloat16), wkt_ref[...],
                  preferred_element_type=jnp.float32) + bk_ref[...]   # (nb*S, Dh)
    v_h = jnp.dot(x_v.astype(jnp.bfloat16), wvt_ref[...],
                  preferred_element_type=jnp.float32) + bv_ref[...]   # (nb*S, Dh)

    Dh = q_h.shape[-1]
    q3 = q_h.reshape(nb, L, Dh).astype(jnp.bfloat16)
    k3 = k_h.reshape(nb, S, Dh).astype(jnp.bfloat16)
    v3 = v_h.reshape(nb, S, Dh).astype(jnp.bfloat16)

    # --- scaled dot-product attention for this head (scale folded into Wq) ---
    s = jnp.einsum('bld,bsd->bls', q3, k3,
                   preferred_element_type=jnp.float32)                # (nb, L, S) f32
    m = jnp.max(s, axis=-1, keepdims=True)
    p = jnp.exp(s - m)
    p = p * pl.reciprocal(jnp.sum(p, axis=-1, keepdims=True), approx=True)
    o_h = jnp.einsum('bls,bsd->bld', p.astype(jnp.bfloat16), v3,
                     preferred_element_type=jnp.float32)              # (nb, L, Dh)

    # --- this head's slice of the output projection, accumulated in f32 ---
    acc_ref[...] += jnp.dot(o_h.reshape(nb * L, Dh).astype(jnp.bfloat16),
                            wot_ref[...],
                            preferred_element_type=jnp.float32)       # (nb*L, E)

    # --- residual + LayerNorm on the last head step ---
    @pl.when(h == pl.num_programs(1) - 1)
    def _finalize():
        res = acc_ref[...]                                            # f32 (nb*L, E)
        mean = jnp.mean(res, axis=-1, keepdims=True)
        var = jnp.mean(jnp.square(res - mean), axis=-1, keepdims=True)
        y = (res - mean) * jax.lax.rsqrt(var + ln_eps)
        y = y * gamma_ref[...] + beta_ref[...]
        o_ref[...] = y.reshape(nb, L, E).astype(o_ref.dtype)


def _pick_block_n(n, cap=8):
    """Largest divisor of n not exceeding cap (batch elements per grid step)."""
    for bn in range(min(n, cap), 0, -1):
        if n % bn == 0:
            return bn
    return 1


def _prepare_params(params, nhead):
    """Pre-transpose / pre-scale / cast weights once (outside the kernel)."""
    E = params["wq"].shape[0]
    Dh = E // nhead
    scale = 1.0 / float(Dh) ** 0.5
    f32 = jnp.float32
    return dict(
        wq_t=(params["wq"].astype(f32).T * scale).astype(jnp.bfloat16),  # (E, E)
        wk_t=params["wk"].astype(f32).T.astype(jnp.bfloat16),            # (E, E)
        wv_t=params["wv"].astype(f32).T.astype(jnp.bfloat16),            # (E, E)
        wo_t=params["wo"].astype(f32).T.astype(jnp.bfloat16),            # (E, E)
        bq=(params["bq"].astype(f32) * scale).reshape(1, E),
        bk=params["bk"].astype(f32).reshape(1, E),
        bv=params["bv"].astype(f32).reshape(1, E),
        bo=params["bo"].astype(f32).reshape(1, E),
        gamma=params["gamma"].astype(f32).reshape(1, E),
        beta=params["beta"].astype(f32).reshape(1, E),
    )


def cross_attention(query, key, value, params, *, nhead, block_n=None,
                    ln_eps=1e-5):
    """query: (L, N, E); key/value: (S, N, E).  Returns (L, N, E) (PyTorch layout)."""
    L, N, E = query.shape
    S = key.shape[0]
    assert E % nhead == 0
    Dh = E // nhead

    # seq-first -> batch-first so the grid blocks over batch (layout plumbing).
    qb = jnp.transpose(query, (1, 0, 2))  # (N, L, E)
    kb = jnp.transpose(key, (1, 0, 2))    # (N, S, E)
    vb = jnp.transpose(value, (1, 0, 2))  # (N, S, E)

    p = _prepare_params(params, nhead)

    if block_n is None:
        block_n = _pick_block_n(N)
    assert N % block_n == 0
    grid = (N // block_n, nhead)

    kernel = functools.partial(_cross_attn_kernel, ln_eps=ln_eps)

    out_b = pl.pallas_call(
        kernel,
        out_shape=jax.ShapeDtypeStruct((N, L, E), query.dtype),
        grid=grid,
        in_specs=[
            pl.BlockSpec((block_n, L, E), lambda b, h: (b, 0, 0)),  # query
            pl.BlockSpec((block_n, S, E), lambda b, h: (b, 0, 0)),  # key
            pl.BlockSpec((block_n, S, E), lambda b, h: (b, 0, 0)),  # value
            pl.BlockSpec((E, Dh), lambda b, h: (0, h)),             # Wq^T (scaled), head cols
            pl.BlockSpec((E, Dh), lambda b, h: (0, h)),             # Wk^T, head cols
            pl.BlockSpec((E, Dh), lambda b, h: (0, h)),             # Wv^T, head cols
            pl.BlockSpec((1, Dh), lambda b, h: (0, h)),             # bq (scaled)
            pl.BlockSpec((1, Dh), lambda b, h: (0, h)),             # bk
            pl.BlockSpec((1, Dh), lambda b, h: (0, h)),             # bv
            pl.BlockSpec((Dh, E), lambda b, h: (h, 0)),             # Wo^T, head rows
            pl.BlockSpec((1, E), lambda b, h: (0, 0)),              # bo
            pl.BlockSpec((1, E), lambda b, h: (0, 0)),              # gamma
            pl.BlockSpec((1, E), lambda b, h: (0, 0)),              # beta
        ],
        out_specs=pl.BlockSpec((block_n, L, E), lambda b, h: (b, 0, 0)),
        scratch_shapes=[pltpu.VMEM((block_n * L, E), jnp.float32)],
        compiler_params=pltpu.CompilerParams(
            dimension_semantics=("parallel", "arbitrary")),
    )(qb, kb, vb,
      p["wq_t"], p["wk_t"], p["wv_t"], p["bq"], p["bk"], p["bv"],
      p["wo_t"], p["bo"], p["gamma"], p["beta"])

    return jnp.transpose(out_b, (1, 0, 2))  # back to (L, N, E)


def cross_attention_reference(query, key, value, params, *, nhead,
                              ln_eps=1e-5):
    """Pure-JAX reference with the same bf16 weight casts (for validation)."""
    L, N, E = query.shape
    S = key.shape[0]
    Dh = E // nhead
    p = _prepare_params(params, nhead)

    def proj(x, wt, b):  # x: (T, N, E)
        y = jnp.einsum('tne,ed->tnd', x.astype(jnp.bfloat16), wt,
                       preferred_element_type=jnp.float32) + b.reshape(1, 1, E)
        return y

    q = proj(query, p["wq_t"], p["bq"]).reshape(L, N, nhead, Dh)
    k = proj(key, p["wk_t"], p["bk"]).reshape(S, N, nhead, Dh)
    v = proj(value, p["wv_t"], p["bv"]).reshape(S, N, nhead, Dh)

    s = jnp.einsum('lnhd,snhd->nhls', q.astype(jnp.bfloat16),
                   k.astype(jnp.bfloat16), preferred_element_type=jnp.float32)
    pw = jax.nn.softmax(s, axis=-1)
    o = jnp.einsum('nhls,snhd->lnhd', pw.astype(jnp.bfloat16),
                   v.astype(jnp.bfloat16), preferred_element_type=jnp.float32)
    o = o.reshape(L, N, E)
    attn = jnp.einsum('lne,ed->lnd', o.astype(jnp.bfloat16), p["wo_t"],
                      preferred_element_type=jnp.float32) + p["bo"].reshape(1, 1, E)

    res = query.astype(jnp.float32) + attn
    mean = jnp.mean(res, axis=-1, keepdims=True)
    var = jnp.mean(jnp.square(res - mean), axis=-1, keepdims=True)
    y = (res - mean) * jax.lax.rsqrt(var + ln_eps)
    return y * p["gamma"].reshape(1, 1, E) + p["beta"].reshape(1, 1, E)


def init_params(key, d_model):
    """Deterministic synthetic parameters (shapes match nn.MultiheadAttention + LayerNorm)."""
    ks = jax.random.split(key, 4)
    # in_proj_weight is (3*E, E) in PyTorch; split into Wq/Wk/Wv
    in_proj_w = jax.random.normal(ks[0], (3 * d_model, d_model), jnp.float32) * 0.05
    in_proj_b = jax.random.normal(ks[1], (3 * d_model,), jnp.float32) * 0.01
    wq, wk, wv = jnp.split(in_proj_w, 3, axis=0)
    bq, bk, bv = jnp.split(in_proj_b, 3, axis=0)
    wo = jax.random.normal(ks[2], (d_model, d_model), jnp.float32) * 0.05
    bo = jax.random.normal(ks[3], (d_model,), jnp.float32) * 0.01
    gamma = jnp.ones((d_model,), jnp.float32)
    beta = jnp.zeros((d_model,), jnp.float32)
    return dict(wq=wq, wk=wk, wv=wv, bq=bq, bk=bk, bv=bv,
                wo=wo, bo=bo, gamma=gamma, beta=beta)


if __name__ == "__main__":
    # Small but TPU-layout-friendly shapes: L = S = 8, batch N = 2,
    # d_model E = 256, nhead = 2 -> head_dim = 128 (lane-aligned head blocks,
    # lane-dense (>=128) output tiles).
    L, S, N, E, H = 8, 8, 2, 256, 2

    root = jax.random.PRNGKey(0)
    k_q, k_k, k_v, k_p = jax.random.split(root, 4)
    query = jax.random.normal(k_q, (L, N, E), jnp.float32)
    key_ = jax.random.normal(k_k, (S, N, E), jnp.float32)
    value = jax.random.normal(k_v, (S, N, E), jnp.float32)
    params = init_params(k_p, E)

    fn = jax.jit(functools.partial(cross_attention, nhead=H))
    out = jax.block_until_ready(fn(query, key_, value, params))
    assert out.shape == (L, N, E)
    assert bool(jnp.all(jnp.isfinite(out)))

    # Loose correctness check against a pure-JAX reference (same bf16 casts;
    # only the approx softmax reciprocal / accumulation order differ).
    ref = cross_attention_reference(query, key_, value, params, nhead=H)
    err = float(jnp.max(jnp.abs(out - ref)))
    assert err < 5e-2, f"max abs error vs reference too large: {err}"

    print("KERNEL_OK")
</pallas_src>

<mosaic_0001>
module attributes {stable_mosaic.version = 11 : i64} {
  func.func @_cross_attn_kernel(%arg0: i32, %arg1: i32, %arg2: memref<2x8x256xf32, #tpu.memory_space<vmem>>, %arg3: memref<2x8x256xf32, #tpu.memory_space<vmem>>, %arg4: memref<2x8x256xf32, #tpu.memory_space<vmem>>, %arg5: memref<256x128xbf16, #tpu.memory_space<vmem>>, %arg6: memref<256x128xbf16, #tpu.memory_space<vmem>>, %arg7: memref<256x128xbf16, #tpu.memory_space<vmem>>, %arg8: memref<1x128xf32, #tpu.memory_space<vmem>>, %arg9: memref<1x128xf32, #tpu.memory_space<vmem>>, %arg10: memref<1x128xf32, #tpu.memory_space<vmem>>, %arg11: memref<128x256xbf16, #tpu.memory_space<vmem>>, %arg12: memref<1x256xf32, #tpu.memory_space<vmem>>, %arg13: memref<1x256xf32, #tpu.memory_space<vmem>>, %arg14: memref<1x256xf32, #tpu.memory_space<vmem>>, %arg15: memref<2x8x256xf32, #tpu.memory_space<vmem>>, %arg16: memref<16x256xf32, #tpu.memory_space<vmem>>) attributes {dimension_semantics = [#tpu.dimension_semantics<parallel>, #tpu.dimension_semantics<arbitrary>], iteration_bounds = array<i64: 1, 2>, scalar_prefetch = 0 : i64, scratch_operands = 1 : i64, tpu.core_type = #tpu.core_type<tc>, window_params = [{transform_indices = @transform_0, window_bounds = array<i64: 2, 8, 256>}, {transform_indices = @transform_1, window_bounds = array<i64: 2, 8, 256>}, {transform_indices = @transform_2, window_bounds = array<i64: 2, 8, 256>}, {transform_indices = @transform_3, window_bounds = array<i64: 256, 128>}, {transform_indices = @transform_4, window_bounds = array<i64: 256, 128>}, {transform_indices = @transform_5, window_bounds = array<i64: 256, 128>}, {transform_indices = @transform_6, window_bounds = array<i64: 1, 128>}, {transform_indices = @transform_7, window_bounds = array<i64: 1, 128>}, {transform_indices = @transform_8, window_bounds = array<i64: 1, 128>}, {transform_indices = @transform_9, window_bounds = array<i64: 128, 256>}, {pipeline_mode = #tpu.pipeline_mode<synchronous>, transform_indices = @transform_10, window_bounds = array<i64: 1, 256>}, {pipeline_mode = #tpu.pipeline_mode<synchronous>, transform_indices = @transform_11, window_bounds = array<i64: 1, 256>}, {pipeline_mode = #tpu.pipeline_mode<synchronous>, transform_indices = @transform_12, window_bounds = array<i64: 1, 256>}, {transform_indices = @transform_13, window_bounds = array<i64: 2, 8, 256>}]} {
    %c0 = arith.constant 0 : index
    %c0_0 = arith.constant 0 : index
    %c0_1 = arith.constant 0 : index
    %0 = vector.load %arg2[%c0, %c0_0, %c0_1] : memref<2x8x256xf32, #tpu.memory_space<vmem>>, vector<2x8x256xf32>
    %1 = vector.shape_cast %0 : vector<2x8x256xf32> to vector<16x256xf32>
    %c0_2 = arith.constant 0 : index
    %c0_3 = arith.constant 0 : index
    %c0_4 = arith.constant 0 : index
    %2 = vector.load %arg3[%c0_2, %c0_3, %c0_4] : memref<2x8x256xf32, #tpu.memory_space<vmem>>, vector<2x8x256xf32>
    %3 = vector.shape_cast %2 : vector<2x8x256xf32> to vector<16x256xf32>
    %c0_5 = arith.constant 0 : index
    %c0_6 = arith.constant 0 : index
    %c0_7 = arith.constant 0 : index
    %4 = vector.load %arg4[%c0_5, %c0_6, %c0_7] : memref<2x8x256xf32, #tpu.memory_space<vmem>>, vector<2x8x256xf32>
    %5 = vector.shape_cast %4 : vector<2x8x256xf32> to vector<16x256xf32>
    %c0_i32 = arith.constant 0 : i32
    %6 = arith.cmpi eq, %arg1, %c0_i32 : i32
    %7 = arith.extui %6 : i1 to i32
    %c0_i32_8 = arith.constant 0 : i32
    %8 = arith.cmpi ne, %7, %c0_i32_8 : i32
    scf.if %8 {
      %c0_35 = arith.constant 0 : index
      %c0_36 = arith.constant 0 : index
      %56 = vector.load %arg12[%c0_35, %c0_36] : memref<1x256xf32, #tpu.memory_space<vmem>>, vector<1x256xf32>
      %57 = vector.broadcast %56 : vector<1x256xf32> to vector<16x256xf32>
      %58 = arith.addf %1, %57 : vector<16x256xf32>
      %c0_37 = arith.constant 0 : index
      %c0_38 = arith.constant 0 : index
      %59 = vector.load %arg16[%c0_37, %c0_38] : memref<16x256xf32, #tpu.memory_space<vmem>>, vector<16x256xf32>
      tpu.vector_store %arg16[%c0_37, %c0_38], %58 {strides = array<i32>} : memref<16x256xf32, #tpu.memory_space<vmem>>, vector<16x256xf32>,
    } else {
    }
    %9 = arith.truncf %1 : vector<16x256xf32> to vector<16x256xbf16>
    %c0_9 = arith.constant 0 : index
    %c0_10 = arith.constant 0 : index
    %10 = vector.load %arg5[%c0_9, %c0_10] : memref<256x128xbf16, #tpu.memory_space<vmem>>, vector<256x128xbf16>
    %cst = arith.constant dense<0.000000e+00> : vector<16x128xf32>
    %11 = tpu.matmul %9, %10, %cst {dimension_numbers = #tpu.dot_dimension_numbers<[1], [0], [0], [1], [0, 0, 1, 1], [], []>} : vector<16x256xbf16>, vector<256x128xbf16>, vector<16x128xf32> -> vector<16x128xf32>
    %c0_11 = arith.constant 0 : index
    %c0_12 = arith.constant 0 : index
    %12 = vector.load %arg8[%c0_11, %c0_12] : memref<1x128xf32, #tpu.memory_space<vmem>>, vector<1x128xf32>
    %13 = vector.broadcast %12 : vector<1x128xf32> to vector<16x128xf32>
    %14 = arith.addf %11, %13 : vector<16x128xf32>
    %15 = arith.truncf %3 : vector<16x256xf32> to vector<16x256xbf16>
    %c0_13 = arith.constant 0 : index
    %c0_14 = arith.constant 0 : index
    %16 = vector.load %arg6[%c0_13, %c0_14] : memref<256x128xbf16, #tpu.memory_space<vmem>>, vector<256x128xbf16>
    %cst_15 = arith.constant dense<0.000000e+00> : vector<16x128xf32>
    %17 = tpu.matmul %15, %16, %cst_15 {dimension_numbers = #tpu.dot_dimension_numbers<[1], [0], [0], [1], [0, 0, 1, 1], [], []>} : vector<16x256xbf16>, vector<256x128xbf16>, vector<16x128xf32> -> vector<16x128xf32>
    %c0_16 = arith.constant 0 : index
    %c0_17 = arith.constant 0 : index
    %18 = vector.load %arg9[%c0_16, %c0_17] : memref<1x128xf32, #tpu.memory_space<vmem>>, vector<1x128xf32>
    %19 = vector.broadcast %18 : vector<1x128xf32> to vector<16x128xf32>
    %20 = arith.addf %17, %19 : vector<16x128xf32>
    %21 = arith.truncf %5 : vector<16x256xf32> to vector<16x256xbf16>
    %c0_18 = arith.constant 0 : index
    %c0_19 = arith.constant 0 : index
    %22 = vector.load %arg7[%c0_18, %c0_19] : memref<256x128xbf16, #tpu.memory_space<vmem>>, vector<256x128xbf16>
    %cst_20 = arith.constant dense<0.000000e+00> : vector<16x128xf32>
    %23 = tpu.matmul %21, %22, %cst_20 {dimension_numbers = #tpu.dot_dimension_numbers<[1], [0], [0], [1], [0, 0, 1, 1], [], []>} : vector<16x256xbf16>, vector<256x128xbf16>, vector<16x128xf32> -> vector<16x128xf32>
    %c0_21 = arith.constant 0 : index
    %c0_22 = arith.constant 0 : index
    %24 = vector.load %arg10[%c0_21, %c0_22] : memref<1x128xf32, #tpu.memory_space<vmem>>, vector<1x128xf32>
    %25 = vector.broadcast %24 : vector<1x128xf32> to vector<16x128xf32>
    %26 = arith.addf %23, %25 : vector<16x128xf32>
    %27 = vector.shape_cast %14 : vector<16x128xf32> to vector<2x8x128xf32>
    %28 = arith.truncf %27 : vector<2x8x128xf32> to vector<2x8x128xbf16>
    %29 = vector.shape_cast %20 : vector<16x128xf32> to vector<2x8x128xf32>
    %30 = arith.truncf %29 : vector<2x8x128xf32> to vector<2x8x128xbf16>
    %31 = vector.shape_cast %26 : vector<16x128xf32> to vector<2x8x128xf32>
    %32 = arith.truncf %31 : vector<2x8x128xf32> to vector<2x8x128xbf16>
    "tpu.trace_start"() <{level = 10 : i32, message = "bld,bsd->bls"}> : () -> ()
    %cst_23 = arith.constant dense<0.000000e+00> : vector<2x8x8xf32>
    %33 = tpu.matmul %28, %30, %cst_23 {dimension_numbers = #tpu.dot_dimension_numbers<[2], [2], [1], [1], [0, 0, 0, 1, 1, 1], [0], [0]>} : vector<2x8x128xbf16>, vector<2x8x128xbf16>, vector<2x8x8xf32> -> vector<2x8x8xf32>
    "tpu.trace_stop"() : () -> ()
    %cst_24 = arith.constant dense<0xFF800000> : vector<2x8xf32>
    %34 = vector.multi_reduction <maximumf>, %33, %cst_24 [2] : vector<2x8x8xf32> to vector<2x8xf32>
    %35 = vector.shape_cast %34 : vector<2x8xf32> to vector<2x8x1xf32>
    %36 = vector.broadcast %35 : vector<2x8x1xf32> to vector<2x8x8xf32>
    %37 = arith.subf %33, %36 : vector<2x8x8xf32>
    %38 = math.exp %37 : vector<2x8x8xf32>
    %cst_25 = arith.constant dense<0.000000e+00> : vector<2x8xf32>
    %39 = vector.multi_reduction <add>, %38, %cst_25 [2] : vector<2x8x8xf32> to vector<2x8xf32>
    %40 = vector.shape_cast %39 : vector<2x8xf32> to vector<2x8x1xf32>
    %41 = tpu.reciprocal %40 {approx = true} : vector<2x8x1xf32> -> vector<2x8x1xf32>
    %42 = vector.broadcast %41 : vector<2x8x1xf32> to vector<2x8x8xf32>
    %43 = arith.mulf %38, %42 : vector<2x8x8xf32>
    %44 = arith.truncf %43 : vector<2x8x8xf32> to vector<2x8x8xbf16>
    "tpu.trace_start"() <{level = 10 : i32, message = "bls,bsd->bld"}> : () -> ()
    %cst_26 = arith.constant dense<0.000000e+00> : vector<2x8x128xf32>
    %45 = tpu.matmul %44, %32, %cst_26 {dimension_numbers = #tpu.dot_dimension_numbers<[2], [1], [1], [2], [0, 0, 0, 1, 1, 2], [0], [0]>} : vector<2x8x8xbf16>, vector<2x8x128xbf16>, vector<2x8x128xf32> -> vector<2x8x128xf32>
    "tpu.trace_stop"() : () -> ()
    %c0_27 = arith.constant 0 : index
    %c0_28 = arith.constant 0 : index
    %46 = vector.load %arg16[%c0_27, %c0_28] : memref<16x256xf32, #tpu.memory_space<vmem>>, vector<16x256xf32>
    %47 = vector.shape_cast %45 : vector<2x8x128xf32> to vector<16x128xf32>
    %48 = arith.truncf %47 : vector<16x128xf32> to vector<16x128xbf16>
    %c0_29 = arith.constant 0 : index
    %c0_30 = arith.constant 0 : index
    %49 = vector.load %arg11[%c0_29, %c0_30] : memref<128x256xbf16, #tpu.memory_space<vmem>>, vector<128x256xbf16>
    %cst_31 = arith.constant dense<0.000000e+00> : vector<16x256xf32>
    %50 = tpu.matmul %48, %49, %cst_31 {dimension_numbers = #tpu.dot_dimension_numbers<[1], [0], [0], [1], [0, 0, 1, 1], [], []>} : vector<16x128xbf16>, vector<128x256xbf16>, vector<16x256xf32> -> vector<16x256xf32>
    %51 = arith.addf %46, %50 : vector<16x256xf32>
    %c0_32 = arith.constant 0 : index
    %c0_33 = arith.constant 0 : index
    %52 = vector.load %arg16[%c0_32, %c0_33] : memref<16x256xf32, #tpu.memory_space<vmem>>, vector<16x256xf32>
    tpu.vector_store %arg16[%c0_32, %c0_33], %51 {strides = array<i32>} : memref<16x256xf32, #tpu.memory_space<vmem>>, vector<16x256xf32>,
    %c1_i32 = arith.constant 1 : i32
    %53 = arith.cmpi eq, %arg1, %c1_i32 : i32
    %54 = arith.extui %53 : i1 to i32
    %c0_i32_34 = arith.constant 0 : i32
    %55 = arith.cmpi ne, %54, %c0_i32_34 : i32
    scf.if %55 {
      %c0_35 = arith.constant 0 : index
      %c0_36 = arith.constant 0 : index
      %56 = vector.load %arg16[%c0_35, %c0_36] : memref<16x256xf32, #tpu.memory_space<vmem>>, vector<16x256xf32>
      %cst_37 = arith.constant dense<0.000000e+00> : vector<16xf32>
      %57 = vector.multi_reduction <add>, %56, %cst_37 [1] : vector<16x256xf32> to vector<16xf32>
      %58 = vector.shape_cast %57 : vector<16xf32> to vector<16x1xf32>
      %cst_38 = arith.constant 2.560000e+02 : f32
      %59 = vector.broadcast %cst_38 : f32 to vector<16x1xf32>
      %60 = arith.divf %58, %59 : vector<16x1xf32>
      %61 = vector.broadcast %60 : vector<16x1xf32> to vector<16x256xf32>
      %62 = arith.subf %56, %61 : vector<16x256xf32>
      %63 = arith.mulf %62, %62 : vector<16x256xf32>
      %cst_39 = arith.constant dense<0.000000e+00> : vector<16xf32>
      %64 = vector.multi_reduction <add>, %63, %cst_39 [1] : vector<16x256xf32> to vector<16xf32>
      %65 = vector.shape_cast %64 : vector<16xf32> to vector<16x1xf32>
      %cst_40 = arith.constant 2.560000e+02 : f32
      %66 = vector.broadcast %cst_40 : f32 to vector<16x1xf32>
      %67 = arith.divf %65, %66 : vector<16x1xf32>
      %68 = vector.broadcast %60 : vector<16x1xf32> to vector<16x256xf32>
      %69 = arith.subf %56, %68 : vector<16x256xf32>
      %cst_41 = arith.constant 9.99999974E-6 : f32
      %70 = vector.broadcast %cst_41 : f32 to vector<16x1xf32>
      %71 = arith.addf %67, %70 : vector<16x1xf32>
      %72 = math.rsqrt %71 : vector<16x1xf32>
      %73 = vector.broadcast %72 : vector<16x1xf32> to vector<16x256xf32>
      %74 = arith.mulf %69, %73 : vector<16x256xf32>
      %c0_42 = arith.constant 0 : index
      %c0_43 = arith.constant 0 : index
      %75 = vector.load %arg13[%c0_42, %c0_43] : memref<1x256xf32, #tpu.memory_space<vmem>>, vector<1x256xf32>
      %76 = vector.broadcast %75 : vector<1x256xf32> to vector<16x256xf32>
      %77 = arith.mulf %74, %76 : vector<16x256xf32>
      %c0_44 = arith.constant 0 : index
      %c0_45 = arith.constant 0 : index
      %78 = vector.load %arg14[%c0_44, %c0_45] : memref<1x256xf32, #tpu.memory_space<vmem>>, vector<1x256xf32>
      %79 = vector.broadcast %78 : vector<1x256xf32> to vector<16x256xf32>
      %80 = arith.addf %77, %79 : vector<16x256xf32>
      %81 = vector.shape_cast %80 : vector<16x256xf32> to vector<2x8x256xf32>
      %c0_46 = arith.constant 0 : index
      %c0_47 = arith.constant 0 : index
      %c0_48 = arith.constant 0 : index
      %82 = vector.load %arg15[%c0_46, %c0_47, %c0_48] : memref<2x8x256xf32, #tpu.memory_space<vmem>>, vector<2x8x256xf32>
      tpu.vector_store %arg15[%c0_46, %c0_47, %c0_48], %81 {strides = array<i32>} : memref<2x8x256xf32, #tpu.memory_space<vmem>>, vector<2x8x256xf32>,
    } else {
    }
    return
  }
  func.func @transform_0(%arg0: i32, %arg1: i32) -> (i32, i32, i32) {
    %c0_i32 = arith.constant 0 : i32
    %c0_i32_0 = arith.constant 0 : i32
    %c0_i32_1 = arith.constant 0 : i32
    return %arg0, %c0_i32, %c0_i32_0 : i32, i32, i32
  }
  func.func @transform_1(%arg0: i32, %arg1: i32) -> (i32, i32, i32) {
    %c0_i32 = arith.constant 0 : i32
    %c0_i32_0 = arith.constant 0 : i32
    %c0_i32_1 = arith.constant 0 : i32
    return %arg0, %c0_i32, %c0_i32_0 : i32, i32, i32
  }
  func.func @transform_2(%arg0: i32, %arg1: i32) -> (i32, i32, i32) {
    %c0_i32 = arith.constant 0 : i32
    %c0_i32_0 = arith.constant 0 : i32
    %c0_i32_1 = arith.constant 0 : i32
    return %arg0, %c0_i32, %c0_i32_0 : i32, i32, i32
  }
  func.func @transform_3(%arg0: i32, %arg1: i32) -> (i32, i32) {
    %c0_i32 = arith.constant 0 : i32
    %c0_i32_0 = arith.constant 0 : i32
    return %c0_i32, %arg1 : i32, i32
  }
  func.func @transform_4(%arg0: i32, %arg1: i32) -> (i32, i32) {
    %c0_i32 = arith.constant 0 : i32
    %c0_i32_0 = arith.constant 0 : i32
    return %c0_i32, %arg1 : i32, i32
  }
  func.func @transform_5(%arg0: i32, %arg1: i32) -> (i32, i32) {
    %c0_i32 = arith.constant 0 : i32
    %c0_i32_0 = arith.constant 0 : i32
    return %c0_i32, %arg1 : i32, i32
  }
  func.func @transform_6(%arg0: i32, %arg1: i32) -> (i32, i32) {
    %c0_i32 = arith.constant 0 : i32
    %c0_i32_0 = arith.constant 0 : i32
    return %c0_i32, %arg1 : i32, i32
  }
  func.func @transform_7(%arg0: i32, %arg1: i32) -> (i32, i32) {
    %c0_i32 = arith.constant 0 : i32
    %c0_i32_0 = arith.constant 0 : i32
    return %c0_i32, %arg1 : i32, i32
  }
  func.func @transform_8(%arg0: i32, %arg1: i32) -> (i32, i32) {
    %c0_i32 = arith.constant 0 : i32
    %c0_i32_0 = arith.constant 0 : i32
    return %c0_i32, %arg1 : i32, i32
  }
  func.func @transform_9(%arg0: i32, %arg1: i32) -> (i32, i32) {
    %c0_i32 = arith.constant 0 : i32
    %c0_i32_0 = arith.constant 0 : i32
    return %arg1, %c0_i32 : i32, i32
  }
  func.func @transform_10(%arg0: i32, %arg1: i32) -> (i32, i32) {
    %c0_i32 = arith.constant 0 : i32
    %c0_i32_0 = arith.constant 0 : i32
    %c0_i32_1 = arith.constant 0 : i32
    return %c0_i32, %c0_i32_0 : i32, i32
  }
  func.func @transform_11(%arg0: i32, %arg1: i32) -> (i32, i32) {
    %c0_i32 = arith.constant 0 : i32
    %c0_i32_0 = arith.constant 0 : i32
    %c0_i32_1 = arith.constant 0 : i32
    return %c0_i32, %c0_i32_0 : i32, i32
  }
  func.func @transform_12(%arg0: i32, %arg1: i32) -> (i32, i32) {
    %c0_i32 = arith.constant 0 : i32
    %c0_i32_0 = arith.constant 0 : i32
    %c0_i32_1 = arith.constant 0 : i32
    return %c0_i32, %c0_i32_0 : i32, i32
  }
  func.func @transform_13(%arg0: i32, %arg1: i32) -> (i32, i32, i32) {
    %c0_i32 = arith.constant 0 : i32
    %c0_i32_0 = arith.constant 0 : i32
    %c0_i32_1 = arith.constant 0 : i32
    return %arg0, %c0_i32, %c0_i32_0 : i32, i32, i32
  }
}

</mosaic_0001>

<llo_original>
// kernel: cross_attention.1
$region0: #{cross_attention.1}
  #allocation0 [shape = 'u32[]', space=smem, size = 0x4, offset = 0x4, fixed_abs, tag = 'smem constant byte address 0x4 - core index']
  #allocation1 [shape = 'u32[144,128]{1,0:T(1,128)}', space=vmem, size = 0x12000, scoped, tag = 'internal scratch']
  #allocation2 [shape = 'f32[16,256]{1,0:T(8,128)}', space=vmem, size = 0x4000, scoped, tag = 'scratch operand']
  %s0 = inlined_call_operand.vmem [shape: f32[2,8,256], index: 0, kind: input, shape index: {}]
  %s1 = inlined_call_operand.vmem [shape: f32[2,8,256], index: 1, kind: input, shape index: {}]
  %s2 = inlined_call_operand.vmem [shape: f32[2,8,256], index: 2, kind: input, shape index: {}]
  %s3 = inlined_call_operand.vmem [shape: bf16[256,256], index: 3, kind: input, shape index: {}]
  %s4 = inlined_call_operand.vmem [shape: bf16[256,256], index: 4, kind: input, shape index: {}]
  %s5 = inlined_call_operand.vmem [shape: bf16[256,256], index: 5, kind: input, shape index: {}]
  %s6 = inlined_call_operand.vmem [shape: f32[1,256], index: 6, kind: input, shape index: {}]
  %s7 = inlined_call_operand.vmem [shape: f32[1,256], index: 7, kind: input, shape index: {}]
  %s8 = inlined_call_operand.vmem [shape: f32[1,256], index: 8, kind: input, shape index: {}]
  %s9 = inlined_call_operand.vmem [shape: bf16[256,256], index: 9, kind: input, shape index: {}]
  %s10 = inlined_call_operand.vmem [shape: f32[1,256], index: 10, kind: input, shape index: {}]
  %s11 = inlined_call_operand.vmem [shape: f32[1,256], index: 11, kind: input, shape index: {}]
  %s12 = inlined_call_operand.vmem [shape: f32[1,256], index: 12, kind: input, shape index: {}]
  %s13 = inlined_call_operand.vmem [shape: f32[2,8,256], index: 13, kind: output, shape index: {}]
  %s14 = sld [smem:[#allocation0]]
  $region216: #{cross_attention.1} parent=0
    _
  %s16 = ssub.s32 1, %s14
  %s17 = scalar_select 0, %s16, %s14
  $region1: #{cross_attention.1} parent=0
    #allocation3 [shape = 'u8[131072]{0}', space=vmem, size = 0x20000, scoped, tag = 'input window, operand 3']
    #allocation4 [shape = 'u8[131072]{0}', space=vmem, size = 0x20000, scoped, tag = 'input window, operand 4']
    #allocation5 [shape = 'u8[131072]{0}', space=vmem, size = 0x20000, scoped, tag = 'input window, operand 5']
    loop: start=0, step=1, limit=4
    $region2: #{cross_attention.1} parent=1 // loop_pre_header
      _
    $region3: #{cross_attention.1} parent=1 // loop_header
      %s19 = sphi 0, %s23
      %p20 = scmp.ge.s32.totalorder %s19, 4
      %s26 = sphi 0, %s38
      %s27 = sphi 0, %s34
      %s28 = sphi 0, %s26
      %s29 = sphi 0, %s27
      %s30 = sphi 0, %s28
      %s31 = sphi 0, %s29
      %s41 = sphi 0, %s43
      %s44 = sphi 0, %s41
      %s45 = sphi 0, %s44
      %s61 = sphi 0, %s45
      %s67 = sphi 0, %s69
      %s70 = sphi 0, %s67
      %s71 = sphi 0, %s70
      %s87 = sphi 0, %s71
      %s93 = sphi 0, %s95
      %s96 = sphi 0, %s93
      %s97 = sphi 0, %s96
      %s113 = sphi 0, %s97
      %s119 = sphi 0, %s121
      %s122 = sphi 0, %s119
      %s123 = sphi 0, %s122
      %s139 = sphi 0, %s123
      %s145 = sphi 0, %s147
      %s148 = sphi 0, %s145
      %s149 = sphi 0, %s148
      %s165 = sphi 0, %s149
      %s171 = sphi 0, %s173
      %s174 = sphi 0, %s171
      %s175 = sphi 0, %s174
      %s191 = sphi 0, %s175
      %s197 = sphi 0, %s199
      %s200 = sphi 0, %s197
      %s201 = sphi 0, %s200
      %s217 = sphi 0, %s201
      %s223 = sphi 0, %s225
      %s226 = sphi 0, %s223
      %s227 = sphi 0, %s226
      %s243 = sphi 0, %s227
      %s249 = sphi 0, %s251
      %s252 = sphi 0, %s249
      %s253 = sphi 0, %s252
      %s269 = sphi 0, %s253
      %s275 = sphi 0, %s277
      %s278 = sphi 0, %s275
      %s279 = sphi 0, %s278
      %s295 = sphi 0, %s279
      %s299 = sphi 0, %s299
      %s301 = sphi 0, %s299
      %s302 = sphi 0, %s301
      %s316 = sphi 0, %s302
      %s320 = sphi 0, %s320
      %s322 = sphi 0, %s320
      %s323 = sphi 0, %s322
      %s337 = sphi 0, %s323
      %s341 = sphi 0, %s341
      %s343 = sphi 0, %s341
      %s344 = sphi 0, %s343
      %s358 = sphi 0, %s344
      %s364 = sphi 0, %s366
      %s367 = sphi 0, %s364
      %s368 = sphi 0, %s367
      %s384 = sphi 0, %s368
    $region4: #{cross_attention.1} parent=1 // loop_header_branch
      %22 = sbr.rel (%p20) target = $region8
    $region5: #{cross_attention.1} parent=1 // loop_body
      %s24 = ssub.s32 %s19, 1
      %s25 = ssub.s32 %s19, 2
      %s32 = sadd.s32 1, %s27
      %p33 = scmp.ge.s32.totalorder %s32, 2
      %s34 = scalar_select %p33, 0, %s32
      %s35 = sadd.s32 1, %s26
      %s36 = scalar_select %p33, %s35, %s26
      %p37 = scmp.ge.s32.totalorder %s36, 1
      %s38 = scalar_select %p37, 0, %s36
      %s39 = ssub.s32 %s26, %s38
      %p40 = scmp.eq.s32.totalorder %s39, 0
      %s42 = sadd.s32 %s41, 1
      %s43 = scalar_select %p40, %s41, %s42
      %p46 = pneg %p40
      %p47 = scmp.eq.s32.totalorder %s19, 1
      %p48 = por %p46, %p47
      %p49 = scmp.ne.s32.totalorder %s41, %s44
      %p50 = scmp.eq.s32.totalorder %s19, 0
      %p51 = por %p49, %p50
      %p52 = scmp.ne.s32.totalorder %s41, %s44
      %p53 = scmp.eq.s32.totalorder %s24, 1
      %p54 = por %p52, %p53
      %p55 = scmp.ne.s32.totalorder %s44, %s45
      %p56 = scmp.eq.s32.totalorder %s24, 0
      %p57 = por %p55, %p56
      %p58 = scmp.ne.s32.totalorder %s44, %s45
      %p59 = scmp.eq.s32.totalorder %s25, 1
      %p60 = por %p58, %p59
      %p62 = scmp.ne.s32.totalorder %s45, %s61
      %p63 = scmp.eq.s32.totalorder %s25, 0
      %p64 = por %p62, %p63
      %s65 = ssub.s32 %s26, %s38
      %p66 = scmp.eq.s32.totalorder %s65, 0
      %s68 = sadd.s32 %s67, 1
      %s69 = scalar_select %p66, %s67, %s68
      %p72 = pneg %p66
      %p73 = scmp.eq.s32.totalorder %s19, 1
      %p74 = por %p72, %p73
      %p75 = scmp.ne.s32.totalorder %s67, %s70
      %p76 = scmp.eq.s32.totalorder %s19, 0
      %p77 = por %p75, %p76
      %p78 = scmp.ne.s32.totalorder %s67, %s70
      %p79 = scmp.eq.s32.totalorder %s24, 1
      %p80 = por %p78, %p79
      %p81 = scmp.ne.s32.totalorder %s70, %s71
      %p82 = scmp.eq.s32.totalorder %s24, 0
      %p83 = por %p81, %p82
      %p84 = scmp.ne.s32.totalorder %s70, %s71
      %p85 = scmp.eq.s32.totalorder %s25, 1
      %p86 = por %p84, %p85
      %p88 = scmp.ne.s32.totalorder %s71, %s87
      %p89 = scmp.eq.s32.totalorder %s25, 0
      %p90 = por %p88, %p89
      %s91 = ssub.s32 %s26, %s38
      %p92 = scmp.eq.s32.totalorder %s91, 0
      %s94 = sadd.s32 %s93, 1
      %s95 = scalar_select %p92, %s93, %s94
      %p98 = pneg %p92
      %p99 = scmp.eq.s32.totalorder %s19, 1
      %p100 = por %p98, %p99
      %p101 = scmp.ne.s32.totalorder %s93, %s96
      %p102 = scmp.eq.s32.totalorder %s19, 0
      %p103 = por %p101, %p102
      %p104 = scmp.ne.s32.totalorder %s93, %s96
      %p105 = scmp.eq.s32.totalorder %s24, 1
      %p106 = por %p104, %p105
      %p107 = scmp.ne.s32.totalorder %s96, %s97
      %p108 = scmp.eq.s32.totalorder %s24, 0
      %p109 = por %p107, %p108
      %p110 = scmp.ne.s32.totalorder %s96, %s97
      %p111 = scmp.eq.s32.totalorder %s25, 1
      %p112 = por %p110, %p111
      %p114 = scmp.ne.s32.totalorder %s97, %s113
      %p115 = scmp.eq.s32.totalorder %s25, 0
      %p116 = por %p114, %p115
      %s117 = ssub.s32 %s27, %s34
      %p118 = scmp.eq.s32.totalorder %s117, 0
      %s120 = sadd.s32 %s119, 1
      %s121 = scalar_select %p118, %s119, %s120
      %p124 = pneg %p118
      %p125 = scmp.eq.s32.totalorder %s19, 1
      %p126 = por %p124, %p125
      %p127 = scmp.ne.s32.totalorder %s119, %s122
      %p128 = scmp.eq.s32.totalorder %s19, 0
      %p129 = por %p127, %p128
      %p130 = scmp.ne.s32.totalorder %s119, %s122
      %p131 = scmp.eq.s32.totalorder %s24, 1
      %p132 = por %p130, %p131
      %p133 = scmp.ne.s32.totalorder %s122, %s123
      %p134 = scmp.eq.s32.totalorder %s24, 0
      %p135 = por %p133, %p134
      %p136 = scmp.ne.s32.totalorder %s122, %s123
      %p137 = scmp.eq.s32.totalorder %s25, 1
      %p138 = por %p136, %p137
      %p140 = scmp.ne.s32.totalorder %s123, %s139
      %p141 = scmp.eq.s32.totalorder %s25, 0
      %p142 = por %p140, %p141
      %s143 = ssub.s32 %s27, %s34
      %p144 = scmp.eq.s32.totalorder %s143, 0
      %s146 = sadd.s32 %s145, 1
      %s147 = scalar_select %p144, %s145, %s146
      %p150 = pneg %p144
      %p151 = scmp.eq.s32.totalorder %s19, 1
      %p152 = por %p150, %p151
      %p153 = scmp.ne.s32.totalorder %s145, %s148
      %p154 = scmp.eq.s32.totalorder %s19, 0
      %p155 = por %p153, %p154
      %p156 = scmp.ne.s32.totalorder %s145, %s148
      %p157 = scmp.eq.s32.totalorder %s24, 1
      %p158 = por %p156, %p157
      %p159 = scmp.ne.s32.totalorder %s148, %s149
      %p160 = scmp.eq.s32.totalorder %s24, 0
      %p161 = por %p159, %p160
      %p162 = scmp.ne.s32.totalorder %s148, %s149
      %p163 = scmp.eq.s32.totalorder %s25, 1
      %p164 = por %p162, %p163
      %p166 = scmp.ne.s32.totalorder %s149, %s165
      %p167 = scmp.eq.s32.totalorder %s25, 0
      %p168 = por %p166, %p167
      %s169 = ssub.s32 %s27, %s34
      %p170 = scmp.eq.s32.totalorder %s169, 0
      %s172 = sadd.s32 %s171, 1
      %s173 = scalar_select %p170, %s171, %s172
      %p176 = pneg %p170
      %p177 = scmp.eq.s32.totalorder %s19, 1
      %p178 = por %p176, %p177
      %p179 = scmp.ne.s32.totalorder %s171, %s174
      %p180 = scmp.eq.s32.totalorder %s19, 0
      %p181 = por %p179, %p180
      %p182 = scmp.ne.s32.totalorder %s171, %s174
      %p183 = scmp.eq.s32.totalorder %s24, 1
      %p184 = por %p182, %p183
      %p185 = scmp.ne.s32.totalorder %s174, %s175
      %p186 = scmp.eq.s32.totalorder %s24, 0
      %p187 = por %p185, %p186
      %p188 = scmp.ne.s32.totalorder %s174, %s175
      %p189 = scmp.eq.s32.totalorder %s25, 1
      %p190 = por %p188, %p189
      %p192 = scmp.ne.s32.totalorder %s175, %s191
      %p193 = scmp.eq.s32.totalorder %s25, 0
      %p194 = por %p192, %p193
      %s195 = ssub.s32 %s27, %s34
      %p196 = scmp.eq.s32.totalorder %s195, 0
      %s198 = sadd.s32 %s197, 1
      %s199 = scalar_select %p196, %s197, %s198
      %p202 = pneg %p196
      %p203 = scmp.eq.s32.totalorder %s19, 1
      %p204 = por %p202, %p203
      %p205 = scmp.ne.s32.totalorder %s197, %s200
      %p206 = scmp.eq.s32.totalorder %s19, 0
      %p207 = por %p205, %p206
      %p208 = scmp.ne.s32.totalorder %s197, %s200
      %p209 = scmp.eq.s32.totalorder %s24, 1
      %p210 = por %p208, %p209
      %p211 = scmp.ne.s32.totalorder %s200, %s201
      %p212 = scmp.eq.s32.totalorder %s24, 0
      %p213 = por %p211, %p212
      %p214 = scmp.ne.s32.totalorder %s200, %s201
      %p215 = scmp.eq.s32.totalorder %s25, 1
      %p216 = por %p214, %p215
      %p218 = scmp.ne.s32.totalorder %s201, %s217
      %p219 = scmp.eq.s32.totalorder %s25, 0
      %p220 = por %p218, %p219
      %s221 = ssub.s32 %s27, %s34
      %p222 = scmp.eq.s32.totalorder %s221, 0
      %s224 = sadd.s32 %s223, 1
      %s225 = scalar_select %p222, %s223, %s224
      %p228 = pneg %p222
      %p229 = scmp.eq.s32.totalorder %s19, 1
      %p230 = por %p228, %p229
      %p231 = scmp.ne.s32.totalorder %s223, %s226
      %p232 = scmp.eq.s32.totalorder %s19, 0
      %p233 = por %p231, %p232
      %p234 = scmp.ne.s32.totalorder %s223, %s226
      %p235 = scmp.eq.s32.totalorder %s24, 1
      %p236 = por %p234, %p235
      %p237 = scmp.ne.s32.totalorder %s226, %s227
      %p238 = scmp.eq.s32.totalorder %s24, 0
      %p239 = por %p237, %p238
      %p240 = scmp.ne.s32.totalorder %s226, %s227
      %p241 = scmp.eq.s32.totalorder %s25, 1
      %p242 = por %p240, %p241
      %p244 = scmp.ne.s32.totalorder %s227, %s243
      %p245 = scmp.eq.s32.totalorder %s25, 0
      %p246 = por %p244, %p245
      %s247 = ssub.s32 %s27, %s34
      %p248 = scmp.eq.s32.totalorder %s247, 0
      %s250 = sadd.s32 %s249, 1
      %s251 = scalar_select %p248, %s249, %s250
      %p254 = pneg %p248
      %p255 = scmp.eq.s32.totalorder %s19, 1
      %p256 = por %p254, %p255
      %p257 = scmp.ne.s32.totalorder %s249, %s252
      %p258 = scmp.eq.s32.totalorder %s19, 0
      %p259 = por %p257, %p258
      %p260 = scmp.ne.s32.totalorder %s249, %s252
      %p261 = scmp.eq.s32.totalorder %s24, 1
      %p262 = por %p260, %p261
      %p263 = scmp.ne.s32.totalorder %s252, %s253
      %p264 = scmp.eq.s32.totalorder %s24, 0
      %p265 = por %p263, %p264
      %p266 = scmp.ne.s32.totalorder %s252, %s253
      %p267 = scmp.eq.s32.totalorder %s25, 1
      %p268 = por %p266, %p267
      %p270 = scmp.ne.s32.totalorder %s253, %s269
      %p271 = scmp.eq.s32.totalorder %s25, 0
      %p272 = por %p270, %p271
      %s273 = ssub.s32 %s27, %s34
      %p274 = scmp.eq.s32.totalorder %s273, 0
      %s276 = sadd.s32 %s275, 1
      %s277 = scalar_select %p274, %s275, %s276
      %p280 = pneg %p274
      %p281 = scmp.eq.s32.totalorder %s19, 1
      %p282 = por %p280, %p281
      %p283 = scmp.ne.s32.totalorder %s275, %s278
      %p284 = scmp.eq.s32.totalorder %s19, 0
      %p285 = por %p283, %p284
      %p286 = scmp.ne.s32.totalorder %s275, %s278
      %p287 = scmp.eq.s32.totalorder %s24, 1
      %p288 = por %p286, %p287
      %p289 = scmp.ne.s32.totalorder %s278, %s279
      %p290 = scmp.eq.s32.totalorder %s24, 0
      %p291 = por %p289, %p290
      %p292 = scmp.ne.s32.totalorder %s278, %s279
      %p293 = scmp.eq.s32.totalorder %s25, 1
      %p294 = por %p292, %p293
      %p296 = scmp.ne.s32.totalorder %s279, %s295
      %p297 = scmp.eq.s32.totalorder %s25, 0
      %p298 = por %p296, %p297
      %s300 = sadd.s32 %s299, 1
      %p303 = scmp.eq.s32.totalorder %s19, 1
      %p304 = scmp.ne.s32.totalorder %s299, %s301
      %p305 = scmp.eq.s32.totalorder %s19, 0
      %p306 = por %p304, %p305
      %p307 = scmp.ne.s32.totalorder %s299, %s301
      %p308 = scmp.eq.s32.totalorder %s24, 1
      %p309 = por %p307, %p308
      %p310 = scmp.ne.s32.totalorder %s301, %s302
      %p311 = scmp.eq.s32.totalorder %s24, 0
      %p312 = por %p310, %p311
      %p313 = scmp.ne.s32.totalorder %s301, %s302
      %p314 = scmp.eq.s32.totalorder %s25, 1
      %p315 = por %p313, %p314
      %p317 = scmp.ne.s32.totalorder %s302, %s316
      %p318 = scmp.eq.s32.totalorder %s25, 0
      %p319 = por %p317, %p318
      %s321 = sadd.s32 %s320, 1
      %p324 = scmp.eq.s32.totalorder %s19, 1
      %p325 = scmp.ne.s32.totalorder %s320, %s322
      %p326 = scmp.eq.s32.totalorder %s19, 0
      %p327 = por %p325, %p326
      %p328 = scmp.ne.s32.totalorder %s320, %s322
      %p329 = scmp.eq.s32.totalorder %s24, 1
      %p330 = por %p328, %p329
      %p331 = scmp.ne.s32.totalorder %s322, %s323
      %p332 = scmp.eq.s32.totalorder %s24, 0
      %p333 = por %p331, %p332
      %p334 = scmp.ne.s32.totalorder %s322, %s323
      %p335 = scmp.eq.s32.totalorder %s25, 1
      %p336 = por %p334, %p335
      %p338 = scmp.ne.s32.totalorder %s323, %s337
      %p339 = scmp.eq.s32.totalorder %s25, 0
      %p340 = por %p338, %p339
      %s342 = sadd.s32 %s341, 1
      %p345 = scmp.eq.s32.totalorder %s19, 1
      %p346 = scmp.ne.s32.totalorder %s341, %s343
      %p347 = scmp.eq.s32.totalorder %s19, 0
      %p348 = por %p346, %p347
      %p349 = scmp.ne.s32.totalorder %s341, %s343
      %p350 = scmp.eq.s32.totalorder %s24, 1
      %p351 = por %p349, %p350
      %p352 = scmp.ne.s32.totalorder %s343, %s344
      %p353 = scmp.eq.s32.totalorder %s24, 0
      %p354 = por %p352, %p353
      %p355 = scmp.ne.s32.totalorder %s343, %s344
      %p356 = scmp.eq.s32.totalorder %s25, 1
      %p357 = por %p355, %p356
      %p359 = scmp.ne.s32.totalorder %s344, %s358
      %p360 = scmp.eq.s32.totalorder %s25, 0
      %p361 = por %p359, %p360
      %s362 = ssub.s32 %s26, %s38
      %p363 = scmp.eq.s32.totalorder %s362, 0
      %s365 = sadd.s32 %s364, 1
      %s366 = scalar_select %p363, %s364, %s365
      %p369 = pneg %p363
      %p370 = scmp.eq.s32.totalorder %s19, 1
      %p371 = por %p369, %p370
      %p372 = scmp.ne.s32.totalorder %s364, %s367
      %p373 = scmp.eq.s32.totalorder %s19, 0
      %p374 = por %p372, %p373
      %p375 = scmp.ne.s32.totalorder %s364, %s367
      %p376 = scmp.eq.s32.totalorder %s24, 1
      %p377 = por %p375, %p376
      %p378 = scmp.ne.s32.totalorder %s367, %s368
      %p379 = scmp.eq.s32.totalorder %s24, 0
      %p380 = por %p378, %p379
      %p381 = scmp.ne.s32.totalorder %s367, %s368
      %p382 = scmp.eq.s32.totalorder %s25, 1
      %p383 = por %p381, %p382
      %p385 = scmp.ne.s32.totalorder %s368, %s384
      %p386 = scmp.eq.s32.totalorder %s25, 0
      %p387 = por %p385, %p386
      %p388 = scmp.le.s32.totalorder 1, %s19
      %p389 = scmp.lt.s32.totalorder %s19, 3
      %p390 = pnand %p388, %p389
      %p391 = pneg %p390
      // Predicated region
      $region9: #{cross_attention.1} parent=5 // pred_check
        _
      $region10: #{cross_attention.1} parent=5 // pred_check_branch
        %393 = sbr.rel (%p390) target = $region12
      $region11: #{cross_attention.1} parent=5 // pred_region
        %s394 = ssub.s32 %s19, 1
        // Predicated region
        $region13: #{cross_attention.1} parent=11 // pred_check
          %p395 = pneg %p57
        $region14: #{cross_attention.1} parent=11 // pred_check_branch
          %397 = sbr.rel (%p395) target = $region16
        $region15: #{cross_attention.1} parent=11 // pred_region
          %s398 = smul.u32 2, %s28
          %p399 = scmp.lt.s32.totalorder %s398, 1
          %s400 = scalar_select %p399, %s398, 1
          %s401 = smul.addr %s400, 2
          %s402 = smul.addr %s401, 8
          %s403 = scalar_lea.vmem %s0, %s402
          %s404 = smul.u32 2, %s28
        $region16: #{cross_attention.1} parent=11 // pred_fallthru
          _
        // Predicated region
        $region17: #{cross_attention.1} parent=11 // pred_check
          %p405 = pneg %p83
        $region18: #{cross_attention.1} parent=11 // pred_check_branch
          %407 = sbr.rel (%p405) target = $region20
        $region19: #{cross_attention.1} parent=11 // pred_region
          %s408 = smul.u32 2, %s28
          %p409 = scmp.lt.s32.totalorder %s408, 1
          %s410 = scalar_select %p409, %s408, 1
          %s411 = smul.addr %s410, 2
          %s412 = smul.addr %s411, 8
          %s413 = scalar_lea.vmem %s1, %s412
          %s414 = smul.u32 2, %s28
        $region20: #{cross_attention.1} parent=11 // pred_fallthru
          _
        // Predicated region
        $region21: #{cross_attention.1} parent=11 // pred_check
          %p415 = pneg %p109
        $region22: #{cross_attention.1} parent=11 // pred_check_branch
          %417 = sbr.rel (%p415) target = $region24
        $region23: #{cross_attention.1} parent=11 // pred_region
          %s418 = smul.u32 2, %s28
          %p419 = scmp.lt.s32.totalorder %s418, 1
          %s420 = scalar_select %p419, %s418, 1
          %s421 = smul.addr %s420, 2
          %s422 = smul.addr %s421, 8
          %s423 = scalar_lea.vmem %s2, %s422
          %s424 = smul.u32 2, %s28
        $region24: #{cross_attention.1} parent=11 // pred_fallthru
          _
        // Predicated region
        $region25: #{cross_attention.1} parent=11 // pred_check
          %p425 = pneg %p312
        $region26: #{cross_attention.1} parent=11 // pred_check_branch
          %427 = sbr.rel (%p425) target = $region28
        $region27: #{cross_attention.1} parent=11 // pred_region
          _
        $region28: #{cross_attention.1} parent=11 // pred_fallthru
          _
        // Predicated region
        $region29: #{cross_attention.1} parent=11 // pred_check
          %p428 = pneg %p333
        $region30: #{cross_attention.1} parent=11 // pred_check_branch
          %430 = sbr.rel (%p428) target = $region32
        $region31: #{cross_attention.1} parent=11 // pred_region
          _
        $region32: #{cross_attention.1} parent=11 // pred_fallthru
          _
        // Predicated region
        $region33: #{cross_attention.1} parent=11 // pred_check
          %p431 = pneg %p354
        $region34: #{cross_attention.1} parent=11 // pred_check_branch
          %433 = sbr.rel (%p431) target = $region36
        $region35: #{cross_attention.1} parent=11 // pred_region
          _
        $region36: #{cross_attention.1} parent=11 // pred_fallthru
          _
      $region12: #{cross_attention.1} parent=5 // pred_fallthru
        _
      %p434 = scmp.lt.s32.totalorder %s19, 2
      // Predicated region
      $region37: #{cross_attention.1} parent=5 // pred_check
        %p435 = pneg %p434
      $region38: #{cross_attention.1} parent=5 // pred_check_branch
        %437 = sbr.rel (%p435) target = $region40
      $region39: #{cross_attention.1} parent=5 // pred_region
        // Predicated region
        $region41: #{cross_attention.1} parent=39 // pred_check
          %p438 = pneg %p129
        $region42: #{cross_attention.1} parent=39 // pred_check_branch
          %440 = sbr.rel (%p438) target = $region44
        $region43: #{cross_attention.1} parent=39 // pred_region
          %s441 = sand.u32 %s119, 1
          %s442 = sand.u32 %s119, 1
          %s443 = smul.addr %s442, 128
          %s444 = scalar_lea.vmem [#allocation3], %s443
          %s445 = smul.addr %s27, 4
          %s446 = scalar_lea.vmem %s3, %s445
          // Predicated region
          $region45: #{cross_attention.1} parent=43 // pred_check
            _
          $region46: #{cross_attention.1} parent=43 // pred_check_branch
            %448 = sbr.rel (0) target = $region48
          $region47: #{cross_attention.1} parent=43 // pred_region
            // Predicated region
            $region49: #{cross_attention.1} parent=47 // pred_check
              _
            $region50: #{cross_attention.1} parent=47 // pred_check_branch
              %450 = sbr.rel target = $region52
            $region51: #{cross_attention.1} parent=47 // pred_region
              // Predicated region
              $region64: #{cross_attention.1} parent=51 // pred_check
                _
              $region65: #{cross_attention.1} parent=51 // pred_check_branch
                %527 = sbr.rel (0) target = $region67
              $region66: #{cross_attention.1} parent=51 // pred_region
                loop: start=0, step=1, limit=1
                $region68: #{cross_attention.1} parent=66 // loop_pre_header
                  _
                $region69: #{cross_attention.1} parent=66 // loop_header
                  %s529 = sphi 0, %s533
                  %p530 = scmp.ge.s32.totalorder %s529, 1
                  %s534 = sphi %s446, %s446
                  %s535 = sphi %s444, %s444
                $region70: #{cross_attention.1} parent=66 // loop_header_branch
                  %532 = sbr.rel (%p530) target = $region74
                $region71: #{cross_attention.1} parent=66 // loop_body
                  _
                $region72: #{cross_attention.1} parent=66 // loop_footer
                  %s533 = sadd.s32 1, %s529
                $region73: #{cross_attention.1} parent=66 // loop_footer_branch
                  %528 = sbr.rel target = $region69
                $region74: #{cross_attention.1} parent=66 // loop_exit
                  _
                loop: start=0, step=1, limit=1
                $region75: #{cross_attention.1} parent=66 // loop_pre_header
                  _
                $region76: #{cross_attention.1} parent=66 // loop_header
                  %s538 = sphi 0, %s542
                  %p539 = scmp.ge.s32.totalorder %s538, 1
                  %s543 = sphi %s446, %s446
                  %s544 = sphi %s444, %s444
                $region77: #{cross_attention.1} parent=66 // loop_header_branch
                  %541 = sbr.rel (%p539) target = $region81
                $region78: #{cross_attention.1} parent=66 // loop_body
                  %v545 = vld [vmem:[%s543] sm:$0xf]
                  %546 = vst [vmem:[%s544] sm:$0xf] %v545
                  %v547 = vld [vmem:[%s543 + $0x8] sm:$0xf]
                  %548 = vst [vmem:[%s544 + $0x4] sm:$0xf] %v547
                  %v549 = vld [vmem:[%s543 + $0x10] sm:$0xf]
                  %550 = vst [vmem:[%s544 + $0x8] sm:$0xf] %v549
                  %v551 = vld [vmem:[%s543 + $0x18] sm:$0xf]
                  %552 = vst [vmem:[%s544 + $0xc] sm:$0xf] %v551
                  %v553 = vld [vmem:[%s543 + $0x20] sm:$0xf]
                  %554 = vst [vmem:[%s544 + $0x10] sm:$0xf] %v553
                  %v555 = vld [vmem:[%s543 + $0x28] sm:$0xf]
                  %556 = vst [vmem:[%s544 + $0x14] sm:$0xf] %v555
                  %v557 = vld [vmem:[%s543 + $0x30] sm:$0xf]
                  %558 = vst [vmem:[%s544 + $0x18] sm:$0xf] %v557
                  %v559 = vld [vmem:[%s543 + $0x38] sm:$0xf]
                  %560 = vst [vmem:[%s544 + $0x1c] sm:$0xf] %v559
                  %v561 = vld [vmem:[%s543 + $0x40] sm:$0xf]
                  %562 = vst [vmem:[%s544 + $0x20] sm:$0xf] %v561
                  %v563 = vld [vmem:[%s543 + $0x48] sm:$0xf]
                  %564 = vst [vmem:[%s544 + $0x24] sm:$0xf] %v563
                  %v565 = vld [vmem:[%s543 + $0x50] sm:$0xf]
                  %566 = vst [vmem:[%s544 + $0x28] sm:$0xf] %v565
                  %v567 = vld [vmem:[%s543 + $0x58] sm:$0xf]
                  %568 = vst [vmem:[%s544 + $0x2c] sm:$0xf] %v567
                  %v569 = vld [vmem:[%s543 + $0x60] sm:$0xf]
                  %570 = vst [vmem:[%s544 + $0x30] sm:$0xf] %v569
                  %v571 = vld [vmem:[%s543 + $0x68] sm:$0xf]
                  %572 = vst [vmem:[%s544 + $0x34] sm:$0xf] %v571
                  %v573 = vld [vmem:[%s543 + $0x70] sm:$0xf]
                  %574 = vst [vmem:[%s544 + $0x38] sm:$0xf] %v573
                  %v575 = vld [vmem:[%s543 + $0x78] sm:$0xf]
                  %576 = vst [vmem:[%s544 + $0x3c] sm:$0xf] %v575
                  %v577 = vld [vmem:[%s543 + $0x80] sm:$0xf]
                  %578 = vst [vmem:[%s544 + $0x40] sm:$0xf] %v577
                  %v579 = vld [vmem:[%s543 + $0x88] sm:$0xf]
                  %580 = vst [vmem:[%s544 + $0x44] sm:$0xf] %v579
                  %v581 = vld [vmem:[%s543 + $0x90] sm:$0xf]
                  %582 = vst [vmem:[%s544 + $0x48] sm:$0xf] %v581
                  %v583 = vld [vmem:[%s543 + $0x98] sm:$0xf]
                  %584 = vst [vmem:[%s544 + $0x4c] sm:$0xf] %v583
                  %v585 = vld [vmem:[%s543 + $0xa0] sm:$0xf]
                  %586 = vst [vmem:[%s544 + $0x50] sm:$0xf] %v585
                  %v587 = vld [vmem:[%s543 + $0xa8] sm:$0xf]
                  %588 = vst [vmem:[%s544 + $0x54] sm:$0xf] %v587
                  %v589 = vld [vmem:[%s543 + $0xb0] sm:$0xf]
                  %590 = vst [vmem:[%s544 + $0x58] sm:$0xf] %v589
                  %v591 = vld [vmem:[%s543 + $0xb8] sm:$0xf]
                  %592 = vst [vmem:[%s544 + $0x5c] sm:$0xf] %v591
                  %v593 = vld [vmem:[%s543 + $0xc0] sm:$0xf]
                  %594 = vst [vmem:[%s544 + $0x60] sm:$0xf] %v593
                  %v595 = vld [vmem:[%s543 + $0xc8] sm:$0xf]
                  %596 = vst [vmem:[%s544 + $0x64] sm:$0xf] %v595
                  %v597 = vld [vmem:[%s543 + $0xd0] sm:$0xf]
                  %598 = vst [vmem:[%s544 + $0x68] sm:$0xf] %v597
                  %v599 = vld [vmem:[%s543 + $0xd8] sm:$0xf]
                  %600 = vst [vmem:[%s544 + $0x6c] sm:$0xf] %v599
                  %v601 = vld [vmem:[%s543 + $0xe0] sm:$0xf]
                  %602 = vst [vmem:[%s544 + $0x70] sm:$0xf] %v601
                  %v603 = vld [vmem:[%s543 + $0xe8] sm:$0xf]
                  %604 = vst [vmem:[%s544 + $0x74] sm:$0xf] %v603
                  %v605 = vld [vmem:[%s543 + $0xf0] sm:$0xf]
                  %606 = vst [vmem:[%s544 + $0x78] sm:$0xf] %v605
                  %v607 = vld [vmem:[%s543 + $0xf8] sm:$0xf]
                  %608 = vst [vmem:[%s544 + $0x7c] sm:$0xf] %v607
                $region79: #{cross_attention.1} parent=66 // loop_footer
                  %s542 = sadd.s32 1, %s538
                $region80: #{cross_attention.1} parent=66 // loop_footer_branch
                  %537 = sbr.rel target = $region76
                $region81: #{cross_attention.1} parent=66 // loop_exit
                  _
              $region67: #{cross_attention.1} parent=51 // pred_fallthru
                _
            $region52: #{cross_attention.1} parent=47 // pred_fallthru
              _
            // Predicated region
            $region53: #{cross_attention.1} parent=47 // pred_check
              _
            $region54: #{cross_attention.1} parent=47 // pred_check_branch
              %452 = sbr.rel (0) target = $region56
            $region55: #{cross_attention.1} parent=47 // pred_region
              loop: start=0, step=1, limit=1
              $region57: #{cross_attention.1} parent=55 // loop_pre_header
                _
              $region58: #{cross_attention.1} parent=55 // loop_header
                %s455 = sphi 0, %s459
                %p456 = scmp.ge.s32.totalorder %s455, 1
                %s460 = sphi %s446, %s446
                %s461 = sphi %s444, %s444
              $region59: #{cross_attention.1} parent=55 // loop_header_branch
                %458 = sbr.rel (%p456) target = $region63
              $region60: #{cross_attention.1} parent=55 // loop_body
                %v462 = vld [vmem:[%s460] sm:$0xf]
                %463 = vst [vmem:[%s461] sm:$0xf] %v462
                %v464 = vld [vmem:[%s460 + $0x8] sm:$0xf]
                %465 = vst [vmem:[%s461 + $0x4] sm:$0xf] %v464
                %v466 = vld [vmem:[%s460 + $0x10] sm:$0xf]
                %467 = vst [vmem:[%s461 + $0x8] sm:$0xf] %v466
                %v468 = vld [vmem:[%s460 + $0x18] sm:$0xf]
                %469 = vst [vmem:[%s461 + $0xc] sm:$0xf] %v468
                %v470 = vld [vmem:[%s460 + $0x20] sm:$0xf]
                %471 = vst [vmem:[%s461 + $0x10] sm:$0xf] %v470
                %v472 = vld [vmem:[%s460 + $0x28] sm:$0xf]
                %473 = vst [vmem:[%s461 + $0x14] sm:$0xf] %v472
                %v474 = vld [vmem:[%s460 + $0x30] sm:$0xf]
                %475 = vst [vmem:[%s461 + $0x18] sm:$0xf] %v474
                %v476 = vld [vmem:[%s460 + $0x38] sm:$0xf]
                %477 = vst [vmem:[%s461 + $0x1c] sm:$0xf] %v476
                %v478 = vld [vmem:[%s460 + $0x40] sm:$0xf]
                %479 = vst [vmem:[%s461 + $0x20] sm:$0xf] %v478
                %v480 = vld [vmem:[%s460 + $0x48] sm:$0xf]
                %481 = vst [vmem:[%s461 + $0x24] sm:$0xf] %v480
                %v482 = vld [vmem:[%s460 + $0x50] sm:$0xf]
                %483 = vst [vmem:[%s461 + $0x28] sm:$0xf] %v482
                %v484 = vld [vmem:[%s460 + $0x58] sm:$0xf]
                %485 = vst [vmem:[%s461 + $0x2c] sm:$0xf] %v484
                %v486 = vld [vmem:[%s460 + $0x60] sm:$0xf]
                %487 = vst [vmem:[%s461 + $0x30] sm:$0xf] %v486
                %v488 = vld [vmem:[%s460 + $0x68] sm:$0xf]
                %489 = vst [vmem:[%s461 + $0x34] sm:$0xf] %v488
                %v490 = vld [vmem:[%s460 + $0x70] sm:$0xf]
                %491 = vst [vmem:[%s461 + $0x38] sm:$0xf] %v490
                %v492 = vld [vmem:[%s460 + $0x78] sm:$0xf]
                %493 = vst [vmem:[%s461 + $0x3c] sm:$0xf] %v492
                %v494 = vld [vmem:[%s460 + $0x80] sm:$0xf]
                %495 = vst [vmem:[%s461 + $0x40] sm:$0xf] %v494
                %v496 = vld [vmem:[%s460 + $0x88] sm:$0xf]
                %497 = vst [vmem:[%s461 + $0x44] sm:$0xf] %v496
                %v498 = vld [vmem:[%s460 + $0x90] sm:$0xf]
                %499 = vst [vmem:[%s461 + $0x48] sm:$0xf] %v498
                %v500 = vld [vmem:[%s460 + $0x98] sm:$0xf]
                %501 = vst [vmem:[%s461 + $0x4c] sm:$0xf] %v500
                %v502 = vld [vmem:[%s460 + $0xa0] sm:$0xf]
                %503 = vst [vmem:[%s461 + $0x50] sm:$0xf] %v502
                %v504 = vld [vmem:[%s460 + $0xa8] sm:$0xf]
                %505 = vst [vmem:[%s461 + $0x54] sm:$0xf] %v504
                %v506 = vld [vmem:[%s460 + $0xb0] sm:$0xf]
                %507 = vst [vmem:[%s461 + $0x58] sm:$0xf] %v506
                %v508 = vld [vmem:[%s460 + $0xb8] sm:$0xf]
                %509 = vst [vmem:[%s461 + $0x5c] sm:$0xf] %v508
                %v510 = vld [vmem:[%s460 + $0xc0] sm:$0xf]
                %511 = vst [vmem:[%s461 + $0x60] sm:$0xf] %v510
                %v512 = vld [vmem:[%s460 + $0xc8] sm:$0xf]
                %513 = vst [vmem:[%s461 + $0x64] sm:$0xf] %v512
                %v514 = vld [vmem:[%s460 + $0xd0] sm:$0xf]
                %515 = vst [vmem:[%s461 + $0x68] sm:$0xf] %v514
                %v516 = vld [vmem:[%s460 + $0xd8] sm:$0xf]
                %517 = vst [vmem:[%s461 + $0x6c] sm:$0xf] %v516
                %v518 = vld [vmem:[%s460 + $0xe0] sm:$0xf]
                %519 = vst [vmem:[%s461 + $0x70] sm:$0xf] %v518
                %v520 = vld [vmem:[%s460 + $0xe8] sm:$0xf]
                %521 = vst [vmem:[%s461 + $0x74] sm:$0xf] %v520
                %v522 = vld [vmem:[%s460 + $0xf0] sm:$0xf]
                %523 = vst [vmem:[%s461 + $0x78] sm:$0xf] %v522
                %v524 = vld [vmem:[%s460 + $0xf8] sm:$0xf]
                %525 = vst [vmem:[%s461 + $0x7c] sm:$0xf] %v524
              $region61: #{cross_attention.1} parent=55 // loop_footer
                %s459 = sadd.s32 1, %s455
              $region62: #{cross_attention.1} parent=55 // loop_footer_branch
                %454 = sbr.rel target = $region58
              $region63: #{cross_attention.1} parent=55 // loop_exit
                _
            $region56: #{cross_attention.1} parent=47 // pred_fallthru
              _
          $region48: #{cross_attention.1} parent=43 // pred_fallthru
            _
          %609 = vnop
        $region44: #{cross_attention.1} parent=39 // pred_fallthru
          _
        // Predicated region
        $region82: #{cross_attention.1} parent=39 // pred_check
          %p610 = pneg %p155
        $region83: #{cross_attention.1} parent=39 // pred_check_branch
          %612 = sbr.rel (%p610) target = $region85
        $region84: #{cross_attention.1} parent=39 // pred_region
          %s613 = sand.u32 %s145, 1
          %s614 = sand.u32 %s145, 1
          %s615 = smul.addr %s614, 128
          %s616 = scalar_lea.vmem [#allocation4], %s615
          %s617 = smul.addr %s27, 4
          %s618 = scalar_lea.vmem %s4, %s617
          // Predicated region
          $region86: #{cross_attention.1} parent=84 // pred_check
            _
          $region87: #{cross_attention.1} parent=84 // pred_check_branch
            %620 = sbr.rel (0) target = $region89
          $region88: #{cross_attention.1} parent=84 // pred_region
            // Predicated region
            $region90: #{cross_attention.1} parent=88 // pred_check
              _
            $region91: #{cross_attention.1} parent=88 // pred_check_branch
              %622 = sbr.rel target = $region93
            $region92: #{cross_attention.1} parent=88 // pred_region
              // Predicated region
              $region105: #{cross_attention.1} parent=92 // pred_check
                _
              $region106: #{cross_attention.1} parent=92 // pred_check_branch
                %699 = sbr.rel (0) target = $region108
              $region107: #{cross_attention.1} parent=92 // pred_region
                loop: start=0, step=1, limit=1
                $region109: #{cross_attention.1} parent=107 // loop_pre_header
                  _
                $region110: #{cross_attention.1} parent=107 // loop_header
                  %s701 = sphi 0, %s705
                  %p702 = scmp.ge.s32.totalorder %s701, 1
                  %s706 = sphi %s618, %s618
                  %s707 = sphi %s616, %s616
                $region111: #{cross_attention.1} parent=107 // loop_header_branch
                  %704 = sbr.rel (%p702) target = $region115
                $region112: #{cross_attention.1} parent=107 // loop_body
                  _
                $region113: #{cross_attention.1} parent=107 // loop_footer
                  %s705 = sadd.s32 1, %s701
                $region114: #{cross_attention.1} parent=107 // loop_footer_branch
                  %700 = sbr.rel target = $region110
                $region115: #{cross_attention.1} parent=107 // loop_exit
                  _
                loop: start=0, step=1, limit=1
                $region116: #{cross_attention.1} parent=107 // loop_pre_header
                  _
                $region117: #{cross_attention.1} parent=107 // loop_header
                  %s710 = sphi 0, %s714
                  %p711 = scmp.ge.s32.totalorder %s710, 1
                  %s715 = sphi %s618, %s618
                  %s716 = sphi %s616, %s616
                $region118: #{cross_attention.1} parent=107 // loop_header_branch
                  %713 = sbr.rel (%p711) target = $region122
                $region119: #{cross_attention.1} parent=107 // loop_body
                  %v717 = vld [vmem:[%s715] sm:$0xf]
                  %718 = vst [vmem:[%s716] sm:$0xf] %v717
                  %v719 = vld [vmem:[%s715 + $0x8] sm:$0xf]
                  %720 = vst [vmem:[%s716 + $0x4] sm:$0xf] %v719
                  %v721 = vld [vmem:[%s715 + $0x10] sm:$0xf]
                  %722 = vst [vmem:[%s716 + $0x8] sm:$0xf] %v721
                  %v723 = vld [vmem:[%s715 + $0x18] sm:$0xf]
                  %724 = vst [vmem:[%s716 + $0xc] sm:$0xf] %v723
                  %v725 = vld [vmem:[%s715 + $0x20] sm:$0xf]
                  %726 = vst [vmem:[%s716 + $0x10] sm:$0xf] %v725
                  %v727 = vld [vmem:[%s715 + $0x28] sm:$0xf]
                  %728 = vst [vmem:[%s716 + $0x14] sm:$0xf] %v727
                  %v729 = vld [vmem:[%s715 + $0x30] sm:$0xf]
                  %730 = vst [vmem:[%s716 + $0x18] sm:$0xf] %v729
                  %v731 = vld [vmem:[%s715 + $0x38] sm:$0xf]
                  %732 = vst [vmem:[%s716 + $0x1c] sm:$0xf] %v731
                  %v733 = vld [vmem:[%s715 + $0x40] sm:$0xf]
                  %734 = vst [vmem:[%s716 + $0x20] sm:$0xf] %v733
                  %v735 = vld [vmem:[%s715 + $0x48] sm:$0xf]
                  %736 = vst [vmem:[%s716 + $0x24] sm:$0xf] %v735
                  %v737 = vld [vmem:[%s715 + $0x50] sm:$0xf]
                  %738 = vst [vmem:[%s716 + $0x28] sm:$0xf] %v737
                  %v739 = vld [vmem:[%s715 + $0x58] sm:$0xf]
                  %740 = vst [vmem:[%s716 + $0x2c] sm:$0xf] %v739
                  %v741 = vld [vmem:[%s715 + $0x60] sm:$0xf]
                  %742 = vst [vmem:[%s716 + $0x30] sm:$0xf] %v741
                  %v743 = vld [vmem:[%s715 + $0x68] sm:$0xf]
                  %744 = vst [vmem:[%s716 + $0x34] sm:$0xf] %v743
                  %v745 = vld [vmem:[%s715 + $0x70] sm:$0xf]
                  %746 = vst [vmem:[%s716 + $0x38] sm:$0xf] %v745
                  %v747 = vld [vmem:[%s715 + $0x78] sm:$0xf]
                  %748 = vst [vmem:[%s716 + $0x3c] sm:$0xf] %v747
                  %v749 = vld [vmem:[%s715 + $0x80] sm:$0xf]
                  %750 = vst [vmem:[%s716 + $0x40] sm:$0xf] %v749
                  %v751 = vld [vmem:[%s715 + $0x88] sm:$0xf]
                  %752 = vst [vmem:[%s716 + $0x44] sm:$0xf] %v751
                  %v753 = vld [vmem:[%s715 + $0x90] sm:$0xf]
                  %754 = vst [vmem:[%s716 + $0x48] sm:$0xf] %v753
                  %v755 = vld [vmem:[%s715 + $0x98] sm:$0xf]
                  %756 = vst [vmem:[%s716 + $0x4c] sm:$0xf] %v755
                  %v757 = vld [vmem:[%s715 + $0xa0] sm:$0xf]
                  %758 = vst [vmem:[%s716 + $0x50] sm:$0xf] %v757
                  %v759 = vld [vmem:[%s715 + $0xa8] sm:$0xf]
                  %760 = vst [vmem:[%s716 + $0x54] sm:$0xf] %v759
                  %v761 = vld [vmem:[%s715 + $0xb0] sm:$0xf]
                  %762 = vst [vmem:[%s716 + $0x58] sm:$0xf] %v761
                  %v763 = vld [vmem:[%s715 + $0xb8] sm:$0xf]
                  %764 = vst [vmem:[%s716 + $0x5c] sm:$0xf] %v763
                  %v765 = vld [vmem:[%s715 + $0xc0] sm:$0xf]
                  %766 = vst [vmem:[%s716 + $0x60] sm:$0xf] %v765
                  %v767 = vld [vmem:[%s715 + $0xc8] sm:$0xf]
                  %768 = vst [vmem:[%s716 + $0x64] sm:$0xf] %v767
                  %v769 = vld [vmem:[%s715 + $0xd0] sm:$0xf]
                  %770 = vst [vmem:[%s716 + $0x68] sm:$0xf] %v769
                  %v771 = vld [vmem:[%s715 + $0xd8] sm:$0xf]
                  %772 = vst [vmem:[%s716 + $0x6c] sm:$0xf] %v771
                  %v773 = vld [vmem:[%s715 + $0xe0] sm:$0xf]
                  %774 = vst [vmem:[%s716 + $0x70] sm:$0xf] %v773
                  %v775 = vld [vmem:[%s715 + $0xe8] sm:$0xf]
                  %776 = vst [vmem:[%s716 + $0x74] sm:$0xf] %v775
                  %v777 = vld [vmem:[%s715 + $0xf0] sm:$0xf]
                  %778 = vst [vmem:[%s716 + $0x78] sm:$0xf] %v777
                  %v779 = vld [vmem:[%s715 + $0xf8] sm:$0xf]
                  %780 = vst [vmem:[%s716 + $0x7c] sm:$0xf] %v779
                $region120: #{cross_attention.1} parent=107 // loop_footer
                  %s714 = sadd.s32 1, %s710
                $region121: #{cross_attention.1} parent=107 // loop_footer_branch
                  %709 = sbr.rel target = $region117
                $region122: #{cross_attention.1} parent=107 // loop_exit
                  _
              $region108: #{cross_attention.1} parent=92 // pred_fallthru
                _
            $region93: #{cross_attention.1} parent=88 // pred_fallthru
              _
            // Predicated region
            $region94: #{cross_attention.1} parent=88 // pred_check
              _
            $region95: #{cross_attention.1} parent=88 // pred_check_branch
              %624 = sbr.rel (0) target = $region97
            $region96: #{cross_attention.1} parent=88 // pred_region
              loop: start=0, step=1, limit=1
              $region98: #{cross_attention.1} parent=96 // loop_pre_header
                _
              $region99: #{cross_attention.1} parent=96 // loop_header
                %s627 = sphi 0, %s631
                %p628 = scmp.ge.s32.totalorder %s627, 1
                %s632 = sphi %s618, %s618
                %s633 = sphi %s616, %s616
              $region100: #{cross_attention.1} parent=96 // loop_header_branch
                %630 = sbr.rel (%p628) target = $region104
              $region101: #{cross_attention.1} parent=96 // loop_body
                %v634 = vld [vmem:[%s632] sm:$0xf]
                %635 = vst [vmem:[%s633] sm:$0xf] %v634
                %v636 = vld [vmem:[%s632 + $0x8] sm:$0xf]
                %637 = vst [vmem:[%s633 + $0x4] sm:$0xf] %v636
                %v638 = vld [vmem:[%s632 + $0x10] sm:$0xf]
                %639 = vst [vmem:[%s633 + $0x8] sm:$0xf] %v638
                %v640 = vld [vmem:[%s632 + $0x18] sm:$0xf]
                %641 = vst [vmem:[%s633 + $0xc] sm:$0xf] %v640
                %v642 = vld [vmem:[%s632 + $0x20] sm:$0xf]
                %643 = vst [vmem:[%s633 + $0x10] sm:$0xf] %v642
                %v644 = vld [vmem:[%s632 + $0x28] sm:$0xf]
                %645 = vst [vmem:[%s633 + $0x14] sm:$0xf] %v644
                %v646 = vld [vmem:[%s632 + $0x30] sm:$0xf]
                %647 = vst [vmem:[%s633 + $0x18] sm:$0xf] %v646
                %v648 = vld [vmem:[%s632 + $0x38] sm:$0xf]
                %649 = vst [vmem:[%s633 + $0x1c] sm:$0xf] %v648
                %v650 = vld [vmem:[%s632 + $0x40] sm:$0xf]
                %651 = vst [vmem:[%s633 + $0x20] sm:$0xf] %v650
                %v652 = vld [vmem:[%s632 + $0x48] sm:$0xf]
                %653 = vst [vmem:[%s633 + $0x24] sm:$0xf] %v652
                %v654 = vld [vmem:[%s632 + $0x50] sm:$0xf]
                %655 = vst [vmem:[%s633 + $0x28] sm:$0xf] %v654
                %v656 = vld [vmem:[%s632 + $0x58] sm:$0xf]
                %657 = vst [vmem:[%s633 + $0x2c] sm:$0xf] %v656
                %v658 = vld [vmem:[%s632 + $0x60] sm:$0xf]
                %659 = vst [vmem:[%s633 + $0x30] sm:$0xf] %v658
                %v660 = vld [vmem:[%s632 + $0x68] sm:$0xf]
                %661 = vst [vmem:[%s633 + $0x34] sm:$0xf] %v660
                %v662 = vld [vmem:[%s632 + $0x70] sm:$0xf]
                %663 = vst [vmem:[%s633 + $0x38] sm:$0xf] %v662
                %v664 = vld [vmem:[%s632 + $0x78] sm:$0xf]
                %665 = vst [vmem:[%s633 + $0x3c] sm:$0xf] %v664
                %v666 = vld [vmem:[%s632 + $0x80] sm:$0xf]
                %667 = vst [vmem:[%s633 + $0x40] sm:$0xf] %v666
                %v668 = vld [vmem:[%s632 + $0x88] sm:$0xf]
                %669 = vst [vmem:[%s633 + $0x44] sm:$0xf] %v668
                %v670 = vld [vmem:[%s632 + $0x90] sm:$0xf]
                %671 = vst [vmem:[%s633 + $0x48] sm:$0xf] %v670
                %v672 = vld [vmem:[%s632 + $0x98] sm:$0xf]
                %673 = vst [vmem:[%s633 + $0x4c] sm:$0xf] %v672
                %v674 = vld [vmem:[%s632 + $0xa0] sm:$0xf]
                %675 = vst [vmem:[%s633 + $0x50] sm:$0xf] %v674
                %v676 = vld [vmem:[%s632 + $0xa8] sm:$0xf]
                %677 = vst [vmem:[%s633 + $0x54] sm:$0xf] %v676
                %v678 = vld [vmem:[%s632 + $0xb0] sm:$0xf]
                %679 = vst [vmem:[%s633 + $0x58] sm:$0xf] %v678
                %v680 = vld [vmem:[%s632 + $0xb8] sm:$0xf]
                %681 = vst [vmem:[%s633 + $0x5c] sm:$0xf] %v680
                %v682 = vld [vmem:[%s632 + $0xc0] sm:$0xf]
                %683 = vst [vmem:[%s633 + $0x60] sm:$0xf] %v682
                %v684 = vld [vmem:[%s632 + $0xc8] sm:$0xf]
                %685 = vst [vmem:[%s633 + $0x64] sm:$0xf] %v684
                %v686 = vld [vmem:[%s632 + $0xd0] sm:$0xf]
                %687 = vst [vmem:[%s633 + $0x68] sm:$0xf] %v686
                %v688 = vld [vmem:[%s632 + $0xd8] sm:$0xf]
                %689 = vst [vmem:[%s633 + $0x6c] sm:$0xf] %v688
                %v690 = vld [vmem:[%s632 + $0xe0] sm:$0xf]
                %691 = vst [vmem:[%s633 + $0x70] sm:$0xf] %v690
                %v692 = vld [vmem:[%s632 + $0xe8] sm:$0xf]
                %693 = vst [vmem:[%s633 + $0x74] sm:$0xf] %v692
                %v694 = vld [vmem:[%s632 + $0xf0] sm:$0xf]
                %695 = vst [vmem:[%s633 + $0x78] sm:$0xf] %v694
                %v696 = vld [vmem:[%s632 + $0xf8] sm:$0xf]
                %697 = vst [vmem:[%s633 + $0x7c] sm:$0xf] %v696
              $region102: #{cross_attention.1} parent=96 // loop_footer
                %s631 = sadd.s32 1, %s627
              $region103: #{cross_attention.1} parent=96 // loop_footer_branch
                %626 = sbr.rel target = $region99
              $region104: #{cross_attention.1} parent=96 // loop_exit
                _
            $region97: #{cross_attention.1} parent=88 // pred_fallthru
              _
          $region89: #{cross_attention.1} parent=84 // pred_fallthru
            _
          %781 = vnop
        $region85: #{cross_attention.1} parent=39 // pred_fallthru
          _
        // Predicated region
        $region123: #{cross_attention.1} parent=39 // pred_check
          %p782 = pneg %p181
        $region124: #{cross_attention.1} parent=39 // pred_check_branch
          %784 = sbr.rel (%p782) target = $region126
        $region125: #{cross_attention.1} parent=39 // pred_region
          %s785 = sand.u32 %s171, 1
          %s786 = sand.u32 %s171, 1
          %s787 = smul.addr %s786, 128
          %s788 = scalar_lea.vmem [#allocation5], %s787
          %s789 = smul.addr %s27, 4
          %s790 = scalar_lea.vmem %s5, %s789
          // Predicated region
          $region127: #{cross_attention.1} parent=125 // pred_check
            _
          $region128: #{cross_attention.1} parent=125 // pred_check_branch
            %792 = sbr.rel (0) target = $region130
          $region129: #{cross_attention.1} parent=125 // pred_region
            // Predicated region
            $region131: #{cross_attention.1} parent=129 // pred_check
              _
            $region132: #{cross_attention.1} parent=129 // pred_check_branch
              %794 = sbr.rel target = $region134
            $region133: #{cross_attention.1} parent=129 // pred_region
              // Predicated region
              $region146: #{cross_attention.1} parent=133 // pred_check
                _
              $region147: #{cross_attention.1} parent=133 // pred_check_branch
                %871 = sbr.rel (0) target = $region149
              $region148: #{cross_attention.1} parent=133 // pred_region
                loop: start=0, step=1, limit=1
                $region150: #{cross_attention.1} parent=148 // loop_pre_header
                  _
                $region151: #{cross_attention.1} parent=148 // loop_header
                  %s873 = sphi 0, %s877
                  %p874 = scmp.ge.s32.totalorder %s873, 1
                  %s878 = sphi %s790, %s790
                  %s879 = sphi %s788, %s788
                $region152: #{cross_attention.1} parent=148 // loop_header_branch
                  %876 = sbr.rel (%p874) target = $region156
                $region153: #{cross_attention.1} parent=148 // loop_body
                  _
                $region154: #{cross_attention.1} parent=148 // loop_footer
                  %s877 = sadd.s32 1, %s873
                $region155: #{cross_attention.1} parent=148 // loop_footer_branch
                  %872 = sbr.rel target = $region151
                $region156: #{cross_attention.1} parent=148 // loop_exit
                  _
                loop: start=0, step=1, limit=1
                $region157: #{cross_attention.1} parent=148 // loop_pre_header
                  _
                $region158: #{cross_attention.1} parent=148 // loop_header
                  %s882 = sphi 0, %s886
                  %p883 = scmp.ge.s32.totalorder %s882, 1
                  %s887 = sphi %s790, %s790
                  %s888 = sphi %s788, %s788
                $region159: #{cross_attention.1} parent=148 // loop_header_branch
                  %885 = sbr.rel (%p883) target = $region163
                $region160: #{cross_attention.1} parent=148 // loop_body
                  %v889 = vld [vmem:[%s887] sm:$0xf]
                  %890 = vst [vmem:[%s888] sm:$0xf] %v889
                  %v891 = vld [vmem:[%s887 + $0x8] sm:$0xf]
                  %892 = vst [vmem:[%s888 + $0x4] sm:$0xf] %v891
                  %v893 = vld [vmem:[%s887 + $0x10] sm:$0xf]
                  %894 = vst [vmem:[%s888 + $0x8] sm:$0xf] %v893
                  %v895 = vld [vmem:[%s887 + $0x18] sm:$0xf]
                  %896 = vst [vmem:[%s888 + $0xc] sm:$0xf] %v895
                  %v897 = vld [vmem:[%s887 + $0x20] sm:$0xf]
                  %898 = vst [vmem:[%s888 + $0x10] sm:$0xf] %v897
                  %v899 = vld [vmem:[%s887 + $0x28] sm:$0xf]
                  %900 = vst [vmem:[%s888 + $0x14] sm:$0xf] %v899
                  %v901 = vld [vmem:[%s887 + $0x30] sm:$0xf]
                  %902 = vst [vmem:[%s888 + $0x18] sm:$0xf] %v901
                  %v903 = vld [vmem:[%s887 + $0x38] sm:$0xf]
                  %904 = vst [vmem:[%s888 + $0x1c] sm:$0xf] %v903
                  %v905 = vld [vmem:[%s887 + $0x40] sm:$0xf]
                  %906 = vst [vmem:[%s888 + $0x20] sm:$0xf] %v905
                  %v907 = vld [vmem:[%s887 + $0x48] sm:$0xf]
                  %908 = vst [vmem:[%s888 + $0x24] sm:$0xf] %v907
                  %v909 = vld [vmem:[%s887 + $0x50] sm:$0xf]
                  %910 = vst [vmem:[%s888 + $0x28] sm:$0xf] %v909
                  %v911 = vld [vmem:[%s887 + $0x58] sm:$0xf]
                  %912 = vst [vmem:[%s888 + $0x2c] sm:$0xf] %v911
                  %v913 = vld [vmem:[%s887 + $0x60] sm:$0xf]
                  %914 = vst [vmem:[%s888 + $0x30] sm:$0xf] %v913
                  %v915 = vld [vmem:[%s887 + $0x68] sm:$0xf]
                  %916 = vst [vmem:[%s888 + $0x34] sm:$0xf] %v915
                  %v917 = vld [vmem:[%s887 + $0x70] sm:$0xf]
                  %918 = vst [vmem:[%s888 + $0x38] sm:$0xf] %v917
                  %v919 = vld [vmem:[%s887 + $0x78] sm:$0xf]
                  %920 = vst [vmem:[%s888 + $0x3c] sm:$0xf] %v919
                  %v921 = vld [vmem:[%s887 + $0x80] sm:$0xf]
                  %922 = vst [vmem:[%s888 + $0x40] sm:$0xf] %v921
                  %v923 = vld [vmem:[%s887 + $0x88] sm:$0xf]
                  %924 = vst [vmem:[%s888 + $0x44] sm:$0xf] %v923
                  %v925 = vld [vmem:[%s887 + $0x90] sm:$0xf]
                  %926 = vst [vmem:[%s888 + $0x48] sm:$0xf] %v925
                  %v927 = vld [vmem:[%s887 + $0x98] sm:$0xf]
                  %928 = vst [vmem:[%s888 + $0x4c] sm:$0xf] %v927
                  %v929 = vld [vmem:[%s887 + $0xa0] sm:$0xf]
                  %930 = vst [vmem:[%s888 + $0x50] sm:$0xf] %v929
                  %v931 = vld [vmem:[%s887 + $0xa8] sm:$0xf]
                  %932 = vst [vmem:[%s888 + $0x54] sm:$0xf] %v931
                  %v933 = vld [vmem:[%s887 + $0xb0] sm:$0xf]
                  %934 = vst [vmem:[%s888 + $0x58] sm:$0xf] %v933
                  %v935 = vld [vmem:[%s887 + $0xb8] sm:$0xf]
                  %936 = vst [vmem:[%s888 + $0x5c] sm:$0xf] %v935
                  %v937 = vld [vmem:[%s887 + $0xc0] sm:$0xf]
                  %938 = vst [vmem:[%s888 + $0x60] sm:$0xf] %v937
                  %v939 = vld [vmem:[%s887 + $0xc8] sm:$0xf]
                  %940 = vst [vmem:[%s888 + $0x64] sm:$0xf] %v939
                  %v941 = vld [vmem:[%s887 + $0xd0] sm:$0xf]
                  %942 = vst [vmem:[%s888 + $0x68] sm:$0xf] %v941
                  %v943 = vld [vmem:[%s887 + $0xd8] sm:$0xf]
                  %944 = vst [vmem:[%s888 + $0x6c] sm:$0xf] %v943
                  %v945 = vld [vmem:[%s887 + $0xe0] sm:$0xf]
                  %946 = vst [vmem:[%s888 + $0x70] sm:$0xf] %v945
                  %v947 = vld [vmem:[%s887 + $0xe8] sm:$0xf]
                  %948 = vst [vmem:[%s888 + $0x74] sm:$0xf] %v947
                  %v949 = vld [vmem:[%s887 + $0xf0] sm:$0xf]
                  %950 = vst [vmem:[%s888 + $0x78] sm:$0xf] %v949
                  %v951 = vld [vmem:[%s887 + $0xf8] sm:$0xf]
                  %952 = vst [vmem:[%s888 + $0x7c] sm:$0xf] %v951
                $region161: #{cross_attention.1} parent=148 // loop_footer
                  %s886 = sadd.s32 1, %s882
                $region162: #{cross_attention.1} parent=148 // loop_footer_branch
                  %881 = sbr.rel target = $region158
                $region163: #{cross_attention.1} parent=148 // loop_exit
                  _
              $region149: #{cross_attention.1} parent=133 // pred_fallthru
                _
            $region134: #{cross_attention.1} parent=129 // pred_fallthru
              _
            // Predicated region
            $region135: #{cross_attention.1} parent=129 // pred_check
              _
            $region136: #{cross_attention.1} parent=129 // pred_check_branch
              %796 = sbr.rel (0) target = $region138
            $region137: #{cross_attention.1} parent=129 // pred_region
              loop: start=0, step=1, limit=1
              $region139: #{cross_attention.1} parent=137 // loop_pre_header
                _
              $region140: #{cross_attention.1} parent=137 // loop_header
                %s799 = sphi 0, %s803
                %p800 = scmp.ge.s32.totalorder %s799, 1
                %s804 = sphi %s790, %s790
                %s805 = sphi %s788, %s788
              $region141: #{cross_attention.1} parent=137 // loop_header_branch
                %802 = sbr.rel (%p800) target = $region145
              $region142: #{cross_attention.1} parent=137 // loop_body
                %v806 = vld [vmem:[%s804] sm:$0xf]
                %807 = vst [vmem:[%s805] sm:$0xf] %v806
                %v808 = vld [vmem:[%s804 + $0x8] sm:$0xf]
                %809 = vst [vmem:[%s805 + $0x4] sm:$0xf] %v808
                %v810 = vld [vmem:[%s804 + $0x10] sm:$0xf]
                %811 = vst [vmem:[%s805 + $0x8] sm:$0xf] %v810
                %v812 = vld [vmem:[%s804 + $0x18] sm:$0xf]
                %813 = vst [vmem:[%s805 + $0xc] sm:$0xf] %v812
                %v814 = vld [vmem:[%s804 + $0x20] sm:$0xf]
                %815 = vst [vmem:[%s805 + $0x10] sm:$0xf] %v814
                %v816 = vld [vmem:[%s804 + $0x28] sm:$0xf]
                %817 = vst [vmem:[%s805 + $0x14] sm:$0xf] %v816
                %v818 = vld [vmem:[%s804 + $0x30] sm:$0xf]
                %819 = vst [vmem:[%s805 + $0x18] sm:$0xf] %v818
                %v820 = vld [vmem:[%s804 + $0x38] sm:$0xf]
                %821 = vst [vmem:[%s805 + $0x1c] sm:$0xf] %v820
                %v822 = vld [vmem:[%s804 + $0x40] sm:$0xf]
                %823 = vst [vmem:[%s805 + $0x20] sm:$0xf] %v822
                %v824 = vld [vmem:[%s804 + $0x48] sm:$0xf]
                %825 = vst [vmem:[%s805 + $0x24] sm:$0xf] %v824
                %v826 = vld [vmem:[%s804 + $0x50] sm:$0xf]
                %827 = vst [vmem:[%s805 + $0x28] sm:$0xf] %v826
                %v828 = vld [vmem:[%s804 + $0x58] sm:$0xf]
                %829 = vst [vmem:[%s805 + $0x2c] sm:$0xf] %v828
                %v830 = vld [vmem:[%s804 + $0x60] sm:$0xf]
                %831 = vst [vmem:[%s805 + $0x30] sm:$0xf] %v830
                %v832 = vld [vmem:[%s804 + $0x68] sm:$0xf]
                %833 = vst [vmem:[%s805 + $0x34] sm:$0xf] %v832
                %v834 = vld [vmem:[%s804 + $0x70] sm:$0xf]
                %835 = vst [vmem:[%s805 + $0x38] sm:$0xf] %v834
                %v836 = vld [vmem:[%s804 + $0x78] sm:$0xf]
                %837 = vst [vmem:[%s805 + $0x3c] sm:$0xf] %v836
                %v838 = vld [vmem:[%s804 + $0x80] sm:$0xf]
                %839 = vst [vmem:[%s805 + $0x40] sm:$0xf] %v838
                %v840 = vld [vmem:[%s804 + $0x88] sm:$0xf]
                %841 = vst [vmem:[%s805 + $0x44] sm:$0xf] %v840
                %v842 = vld [vmem:[%s804 + $0x90] sm:$0xf]
                %843 = vst [vmem:[%s805 + $0x48] sm:$0xf] %v842
                %v844 = vld [vmem:[%s804 + $0x98] sm:$0xf]
                %845 = vst [vmem:[%s805 + $0x4c] sm:$0xf] %v844
                %v846 = vld [vmem:[%s804 + $0xa0] sm:$0xf]
                %847 = vst [vmem:[%s805 + $0x50] sm:$0xf] %v846
                %v848 = vld [vmem:[%s804 + $0xa8] sm:$0xf]
                %849 = vst [vmem:[%s805 + $0x54] sm:$0xf] %v848
                %v850 = vld [vmem:[%s804 + $0xb0] sm:$0xf]
                %851 = vst [vmem:[%s805 + $0x58] sm:$0xf] %v850
                %v852 = vld [vmem:[%s804 + $0xb8] sm:$0xf]
                %853 = vst [vmem:[%s805 + $0x5c] sm:$0xf] %v852
                %v854 = vld [vmem:[%s804 + $0xc0] sm:$0xf]
                %855 = vst [vmem:[%s805 + $0x60] sm:$0xf] %v854
                %v856 = vld [vmem:[%s804 + $0xc8] sm:$0xf]
                %857 = vst [vmem:[%s805 + $0x64] sm:$0xf] %v856
                %v858 = vld [vmem:[%s804 + $0xd0] sm:$0xf]
                %859 = vst [vmem:[%s805 + $0x68] sm:$0xf] %v858
                %v860 = vld [vmem:[%s804 + $0xd8] sm:$0xf]
                %861 = vst [vmem:[%s805 + $0x6c] sm:$0xf] %v860
                %v862 = vld [vmem:[%s804 + $0xe0] sm:$0xf]
                %863 = vst [vmem:[%s805 + $0x70] sm:$0xf] %v862
                %v864 = vld [vmem:[%s804 + $0xe8] sm:$0xf]
                %865 = vst [vmem:[%s805 + $0x74] sm:$0xf] %v864
                %v866 = vld [vmem:[%s804 + $0xf0] sm:$0xf]
                %867 = vst [vmem:[%s805 + $0x78] sm:$0xf] %v866
                %v868 = vld [vmem:[%s804 + $0xf8] sm:$0xf]
                %869 = vst [vmem:[%s805 + $0x7c] sm:$0xf] %v868
              $region143: #{cross_attention.1} parent=137 // loop_footer
                %s803 = sadd.s32 1, %s799
              $region144: #{cross_attention.1} parent=137 // loop_footer_branch
                %798 = sbr.rel target = $region140
              $region145: #{cross_attention.1} parent=137 // loop_exit
                _
            $region138: #{cross_attention.1} parent=129 // pred_fallthru
              _
          $region130: #{cross_attention.1} parent=125 // pred_fallthru
            _
          %953 = vnop
        $region126: #{cross_attention.1} parent=39 // pred_fallthru
          _
        // Predicated region
        $region164: #{cross_attention.1} parent=39 // pred_check
          %p954 = pneg %p207
        $region165: #{cross_attention.1} parent=39 // pred_check_branch
          %956 = sbr.rel (%p954) target = $region167
        $region166: #{cross_attention.1} parent=39 // pred_region
          %p957 = scmp.lt.s32.totalorder %s27, 1
          %s958 = scalar_select %p957, %s27, 1
          %s959 = scalar_lea.vmem %s6, %s958
        $region167: #{cross_attention.1} parent=39 // pred_fallthru
          _
        // Predicated region
        $region168: #{cross_attention.1} parent=39 // pred_check
          %p960 = pneg %p233
        $region169: #{cross_attention.1} parent=39 // pred_check_branch
          %962 = sbr.rel (%p960) target = $region171
        $region170: #{cross_attention.1} parent=39 // pred_region
          %p963 = scmp.lt.s32.totalorder %s27, 1
          %s964 = scalar_select %p963, %s27, 1
          %s965 = scalar_lea.vmem %s7, %s964
        $region171: #{cross_attention.1} parent=39 // pred_fallthru
          _
        // Predicated region
        $region172: #{cross_attention.1} parent=39 // pred_check
          %p966 = pneg %p259
        $region173: #{cross_attention.1} parent=39 // pred_check_branch
          %968 = sbr.rel (%p966) target = $region175
        $region174: #{cross_attention.1} parent=39 // pred_region
          %p969 = scmp.lt.s32.totalorder %s27, 1
          %s970 = scalar_select %p969, %s27, 1
          %s971 = scalar_lea.vmem %s8, %s970
        $region175: #{cross_attention.1} parent=39 // pred_fallthru
          _
        // Predicated region
        $region176: #{cross_attention.1} parent=39 // pred_check
          %p972 = pneg %p285
        $region177: #{cross_attention.1} parent=39 // pred_check_branch
          %974 = sbr.rel (%p972) target = $region179
        $region178: #{cross_attention.1} parent=39 // pred_region
          %s975 = smul.u32 16, %s27
          %p976 = scmp.lt.s32.totalorder %s975, 31
          %s977 = scalar_select %p976, %s975, 31
          %s978 = smul.addr %s977, 2
          %s979 = smul.addr %s978, 4
          %s980 = scalar_lea.vmem %s9, %s979
          %s981 = smul.u32 16, %s27
        $region179: #{cross_attention.1} parent=39 // pred_fallthru
          _
      $region40: #{cross_attention.1} parent=5 // pred_fallthru
        _
      %p982 = scmp.le.s32.totalorder 1, %s19
      %p983 = scmp.lt.s32.totalorder %s19, 3
      %p984 = pnand %p982, %p983
      %p985 = pneg %p984
      // Predicated region
      $region180: #{cross_attention.1} parent=5 // pred_check
        _
      $region181: #{cross_attention.1} parent=5 // pred_check_branch
        %987 = sbr.rel (%p984) target = $region183
      $region182: #{cross_attention.1} parent=5 // pred_region
        %s988 = ssub.s32 %s19, 1
        %s989 = sand.u32 %s122, 1
        %s990 = sand.u32 %s122, 1
        %s991 = smul.addr %s990, 128
        %s992 = scalar_lea.vmem [#allocation3], %s991
        // Predicated region
        $region184: #{cross_attention.1} parent=182 // pred_check
          %p993 = pneg %p135
        $region185: #{cross_attention.1} parent=182 // pred_check_branch
          %995 = sbr.rel (%p993) target = $region187
        $region186: #{cross_attention.1} parent=182 // pred_region
          _
        $region187: #{cross_attention.1} parent=182 // pred_fallthru
          _
        %s996 = sand.u32 %s148, 1
        %s997 = sand.u32 %s148, 1
        %s998 = smul.addr %s997, 128
        %s999 = scalar_lea.vmem [#allocation4], %s998
        // Predicated region
        $region188: #{cross_attention.1} parent=182 // pred_check
          %p1000 = pneg %p161
        $region189: #{cross_attention.1} parent=182 // pred_check_branch
          %1002 = sbr.rel (%p1000) target = $region191
        $region190: #{cross_attention.1} parent=182 // pred_region
          _
        $region191: #{cross_attention.1} parent=182 // pred_fallthru
          _
        %s1003 = sand.u32 %s174, 1
        %s1004 = sand.u32 %s174, 1
        %s1005 = smul.addr %s1004, 128
        %s1006 = scalar_lea.vmem [#allocation5], %s1005
        // Predicated region
        $region192: #{cross_attention.1} parent=182 // pred_check
          %p1007 = pneg %p187
        $region193: #{cross_attention.1} parent=182 // pred_check_branch
          %1009 = sbr.rel (%p1007) target = $region195
        $region194: #{cross_attention.1} parent=182 // pred_region
          _
        $region195: #{cross_attention.1} parent=182 // pred_fallthru
          _
        %s1010 = smul.u32 2, %s28
        %p1011 = scmp.lt.s32.totalorder %s1010, 1
        %s1012 = scalar_select %p1011, %s1010, 1
        %s1013 = smul.addr %s1012, 2
        %s1014 = smul.addr %s1013, 8
        %s1015 = scalar_lea.vmem %s0, %s1014
        %p1016 = pneg %p57
        %p1017 = pneg %p54
        %s1018 = smul.u32 2, %s28
        %p1019 = scmp.lt.s32.totalorder %s1018, 1
        %s1020 = scalar_select %p1019, %s1018, 1
        %s1021 = smul.addr %s1020, 2
        %s1022 = smul.addr %s1021, 8
        %s1023 = scalar_lea.vmem %s1, %s1022
        %p1024 = pneg %p83
        %p1025 = pneg %p80
        %s1026 = smul.u32 2, %s28
        %p1027 = scmp.lt.s32.totalorder %s1026, 1
        %s1028 = scalar_select %p1027, %s1026, 1
        %s1029 = smul.addr %s1028, 2
        %s1030 = smul.addr %s1029, 8
        %s1031 = scalar_lea.vmem %s2, %s1030
        %p1032 = pneg %p109
        %p1033 = pneg %p106
        %s1034 = sand.u32 %s122, 1
        %s1035 = sand.u32 %s122, 1
        %s1036 = smul.addr %s1035, 128
        %s1037 = scalar_lea.vmem [#allocation3], %s1036
        %p1038 = pneg %p135
        %p1039 = pneg %p132
        %s1040 = sand.u32 %s148, 1
        %s1041 = sand.u32 %s148, 1
        %s1042 = smul.addr %s1041, 128
        %s1043 = scalar_lea.vmem [#allocation4], %s1042
        %p1044 = pneg %p161
        %p1045 = pneg %p158
        %s1046 = sand.u32 %s174, 1
        %s1047 = sand.u32 %s174, 1
        %s1048 = smul.addr %s1047, 128
        %s1049 = scalar_lea.vmem [#allocation5], %s1048
        %p1050 = pneg %p187
        %p1051 = pneg %p184
        %p1052 = scmp.lt.s32.totalorder %s29, 1
        %s1053 = scalar_select %p1052, %s29, 1
        %s1054 = scalar_lea.vmem %s6, %s1053
        %p1055 = pneg %p213
        %p1056 = pneg %p210
        %p1057 = scmp.lt.s32.totalorder %s29, 1
        %s1058 = scalar_select %p1057, %s29, 1
        %s1059 = scalar_lea.vmem %s7, %s1058
        %p1060 = pneg %p239
        %p1061 = pneg %p236
        %p1062 = scmp.lt.s32.totalorder %s29, 1
        %s1063 = scalar_select %p1062, %s29, 1
        %s1064 = scalar_lea.vmem %s8, %s1063
        %p1065 = pneg %p265
        %p1066 = pneg %p262
        %s1067 = smul.u32 16, %s29
        %p1068 = scmp.lt.s32.totalorder %s1067, 31
        %s1069 = scalar_select %p1068, %s1067, 31
        %s1070 = smul.addr %s1069, 2
        %s1071 = smul.addr %s1070, 4
        %s1072 = scalar_lea.vmem %s9, %s1071
        %p1073 = pneg %p291
        %p1074 = pneg %p288
        %p1075 = pneg %p312
        %p1076 = pneg %p309
        %p1077 = pneg %p333
        %p1078 = pneg %p330
        %p1079 = pneg %p354
        %p1080 = pneg %p351
        %p1081 = pneg %p380
        %p1082 = pneg %p377
        %s1083 = smul.u32 2, %s28
        %p1084 = scmp.lt.s32.totalorder %s1083, 1
        %s1085 = scalar_select %p1084, %s1083, 1
        %s1086 = smul.addr %s1085, 2
        %s1087 = smul.addr %s1086, 8
        %s1088 = scalar_lea.vmem %s13, %s1087
        %s1089 = smul.u32 2, %s28
        %p1090 = scmp.lt.s32.totalorder %s1089, 1
        %s1091 = scalar_select %p1090, %s1089, 1
        %s1092 = smul.addr %s1091, 2
        %s1093 = smul.addr %s1092, 8
        %s1094 = scalar_lea.vmem %s0, %s1093
        %s1095 = smul.u32 2, %s28
        %s1096 = smul.u32 2, %s28
        %p1097 = scmp.lt.s32.totalorder %s1096, 1
        %s1098 = scalar_select %p1097, %s1096, 1
        %s1099 = smul.addr %s1098, 2
        %s1100 = smul.addr %s1099, 8
        %s1101 = scalar_lea.vmem %s1, %s1100
        %s1102 = smul.u32 2, %s28
        %s1103 = smul.u32 2, %s28
        %p1104 = scmp.lt.s32.totalorder %s1103, 1
        %s1105 = scalar_select %p1104, %s1103, 1
        %s1106 = smul.addr %s1105, 2
        %s1107 = smul.addr %s1106, 8
        %s1108 = scalar_lea.vmem %s2, %s1107
        %s1109 = smul.u32 2, %s28
        %p1110 = scmp.lt.s32.totalorder %s29, 1
        %s1111 = scalar_select %p1110, %s29, 1
        %s1112 = scalar_lea.vmem %s6, %s1111
        %p1113 = scmp.lt.s32.totalorder %s29, 1
        %s1114 = scalar_select %p1113, %s29, 1
        %s1115 = scalar_lea.vmem %s7, %s1114
        %p1116 = scmp.lt.s32.totalorder %s29, 1
        %s1117 = scalar_select %p1116, %s29, 1
        %s1118 = scalar_lea.vmem %s8, %s1117
        %s1119 = smul.u32 16, %s29
        %p1120 = scmp.lt.s32.totalorder %s1119, 31
        %s1121 = scalar_select %p1120, %s1119, 31
        %s1122 = smul.addr %s1121, 2
        %s1123 = smul.addr %s1122, 4
        %s1124 = scalar_lea.vmem %s9, %s1123
        %s1125 = smul.u32 16, %s29
        %s1126 = smul.u32 2, %s28
        %p1127 = scmp.lt.s32.totalorder %s1126, 1
        %s1128 = scalar_select %p1127, %s1126, 1
        %s1129 = smul.addr %s1128, 2
        %s1130 = smul.addr %s1129, 8
        %s1131 = scalar_lea.vmem %s13, %s1130
        %s1132 = smul.u32 2, %s28
        %v1134 = vld [vmem:[%s1094] sm:$0xff]
        %v1135 = vld [vmem:[%s1094 + $0x8] sm:$0xff]
        %v1136 = vld [vmem:[%s1094 + $0x10] sm:$0xff]
        %v1137 = vld [vmem:[%s1094 + $0x18] sm:$0xff]
        %v1138 = vld [vmem:[%s1101] sm:$0xff]
        %v1139 = vld [vmem:[%s1101 + $0x8] sm:$0xff]
        %v1140 = vld [vmem:[%s1101 + $0x10] sm:$0xff]
        %v1141 = vld [vmem:[%s1101 + $0x18] sm:$0xff]
        %v1142 = vld [vmem:[%s1108] sm:$0xff]
        %v1143 = vld [vmem:[%s1108 + $0x8] sm:$0xff]
        %v1144 = vld [vmem:[%s1108 + $0x10] sm:$0xff]
        %v1145 = vld [vmem:[%s1108 + $0x18] sm:$0xff]
        %p1146 = scmp.eq.s32.totalorder %s29, 0
        // Predicated region
        $region196: #{cross_attention.1} parent=182 // pred_check
          %p1147 = pneg %p1146
        $region197: #{cross_attention.1} parent=182 // pred_check_branch
          %1149 = sbr.rel (%p1147) target = $region199
        $region198: #{cross_attention.1} parent=182 // pred_region
          %v1150 = vld [vmem:[%s10] sm:$0x3]
          %v1152 = vlaneseq
          %v1153 = vshrl.u32 %v1152, 7
          %v1154 = vsub.s32 0, %v1153
          %v1155 = vrot.slane %v1150, %v1154
          %v1156 = vlaneseq
          %v1157 = vshrl.u32 %v1156, 7
          %v1158 = vsub.s32 1, %v1157
          %v1159 = vrot.slane %v1150, %v1158
          %v1162 = vadd.f32 %v1134, %v1155
          %v1163 = vadd.f32 %v1135, %v1159
          %v1164 = vadd.f32 %v1136, %v1155
          %v1165 = vadd.f32 %v1137, %v1159
          %1166 = vst [vmem:[#allocation2] sm:$0xff] %v1162
          %1167 = vst [vmem:[#allocation2 + $0x8] sm:$0xff] %v1163
          %1168 = vst [vmem:[#allocation2 + $0x10] sm:$0xff] %v1164
          %1169 = vst [vmem:[#allocation2 + $0x18] sm:$0xff] %v1165
        $region199: #{cross_attention.1} parent=182 // pred_fallthru
          _
        %v1170 = vpack.c.bf16 %v1136, %v1134
        %v1171 = vpack.c.bf16 %v1137, %v1135
        %v1172 = vld [vmem:[%s992] sm:$0xf]
        %v1173 = vld [vmem:[%s992 + $0x4] sm:$0xf]
        %v1174 = vld [vmem:[%s992 + $0x8] sm:$0xf]
        %v1175 = vld [vmem:[%s992 + $0xc] sm:$0xf]
        %v1176 = vld [vmem:[%s992 + $0x10] sm:$0xf]
        %v1177 = vld [vmem:[%s992 + $0x14] sm:$0xf]
        %v1178 = vld [vmem:[%s992 + $0x18] sm:$0xf]
        %v1179 = vld [vmem:[%s992 + $0x1c] sm:$0xf]
        %v1180 = vld [vmem:[%s992 + $0x20] sm:$0xf]
        %v1181 = vld [vmem:[%s992 + $0x24] sm:$0xf]
        %v1182 = vld [vmem:[%s992 + $0x28] sm:$0xf]
        %v1183 = vld [vmem:[%s992 + $0x2c] sm:$0xf]
        %v1184 = vld [vmem:[%s992 + $0x30] sm:$0xf]
        %v1185 = vld [vmem:[%s992 + $0x34] sm:$0xf]
        %v1186 = vld [vmem:[%s992 + $0x38] sm:$0xf]
        %v1187 = vld [vmem:[%s992 + $0x3c] sm:$0xf]
        %v1188 = vld [vmem:[%s992 + $0x40] sm:$0xf]
        %v1189 = vld [vmem:[%s992 + $0x44] sm:$0xf]
        %v1190 = vld [vmem:[%s992 + $0x48] sm:$0xf]
        %v1191 = vld [vmem:[%s992 + $0x4c] sm:$0xf]
        %v1192 = vld [vmem:[%s992 + $0x50] sm:$0xf]
        %v1193 = vld [vmem:[%s992 + $0x54] sm:$0xf]
        %v1194 = vld [vmem:[%s992 + $0x58] sm:$0xf]
        %v1195 = vld [vmem:[%s992 + $0x5c] sm:$0xf]
        %v1196 = vld [vmem:[%s992 + $0x60] sm:$0xf]
        %v1197 = vld [vmem:[%s992 + $0x64] sm:$0xf]
        %v1198 = vld [vmem:[%s992 + $0x68] sm:$0xf]
        %v1199 = vld [vmem:[%s992 + $0x6c] sm:$0xf]
        %v1200 = vld [vmem:[%s992 + $0x70] sm:$0xf]
        %v1201 = vld [vmem:[%s992 + $0x74] sm:$0xf]
        %v1202 = vld [vmem:[%s992 + $0x78] sm:$0xf]
        %v1203 = vld [vmem:[%s992 + $0x7c] sm:$0xf]
        %v1204 = vld [vmem:[%s1112] sm:$0x1]
        %v1206 = vlaneseq
        %v1207 = vshrl.u32 %v1206, 7
        %v1208 = vsub.s32 0, %v1207
        %v1209 = vrot.slane %v1204, %v1208
        %v1243 = vunpack.c.l.b16 %v1172
        %v1244 = vunpack.c.l.b16 %v1173
        %v1245 = vunpack.c.l.b16 %v1174
        %v1246 = vunpack.c.l.b16 %v1175
        %v1247 = vunpack.c.l.b16 %v1176
        %v1248 = vunpack.c.l.b16 %v1177
        %v1249 = vunpack.c.l.b16 %v1178
        %v1250 = vunpack.c.l.b16 %v1179
        %v1251 = vunpack.c.l.b16 %v1180
        %v1252 = vunpack.c.l.b16 %v1181
        %v1253 = vunpack.c.l.b16 %v1182
        %v1254 = vunpack.c.l.b16 %v1183
        %v1255 = vunpack.c.l.b16 %v1184
        %v1256 = vunpack.c.l.b16 %v1185
        %v1257 = vunpack.c.l.b16 %v1186
        %v1258 = vunpack.c.l.b16 %v1187
        %v1259 = vunpack.c.l.b16 %v1188
        %v1260 = vunpack.c.l.b16 %v1189
        %v1261 = vunpack.c.l.b16 %v1190
        %v1262 = vunpack.c.l.b16 %v1191
        %v1263 = vunpack.c.l.b16 %v1192
        %v1264 = vunpack.c.l.b16 %v1193
        %v1265 = vunpack.c.l.b16 %v1194
        %v1266 = vunpack.c.l.b16 %v1195
        %v1267 = vunpack.c.l.b16 %v1196
        %v1268 = vunpack.c.l.b16 %v1197
        %v1269 = vunpack.c.l.b16 %v1198
        %v1270 = vunpack.c.l.b16 %v1199
        %v1271 = vunpack.c.l.b16 %v1200
        %v1272 = vunpack.c.l.b16 %v1201
        %v1273 = vunpack.c.l.b16 %v1202
        %v1274 = vunpack.c.l.b16 %v1203
        %v1275 = vpack.c.b16 %v1244, %v1243
        %v1276 = vpack.c.b16 %v1246, %v1245
        %v1277 = vpack.c.b16 %v1248, %v1247
        %v1278 = vpack.c.b16 %v1250, %v1249
        %v1279 = vpack.c.b16 %v1252, %v1251
        %v1280 = vpack.c.b16 %v1254, %v1253
        %v1281 = vpack.c.b16 %v1256, %v1255
        %v1282 = vpack.c.b16 %v1258, %v1257
        %v1283 = vpack.c.b16 %v1260, %v1259
        %v1284 = vpack.c.b16 %v1262, %v1261
        %v1285 = vpack.c.b16 %v1264, %v1263
        %v1286 = vpack.c.b16 %v1266, %v1265
        %v1287 = vpack.c.b16 %v1268, %v1267
        %v1288 = vpack.c.b16 %v1270, %v1269
        %v1289 = vpack.c.b16 %v1272, %v1271
        %v1290 = vpack.c.b16 %v1274, %v1273
        %1307 = vmatprep.subr.bf16.mxu0 0
        %1308 = vmatpush1.bf16.msra.mxu0 %v1275
        %1309 = vmatprep.subr.bf16.mxu0 0
        %1310 = vmatpush1.bf16.msra.mxu0 %v1276
        %1311 = vmatprep.subr.bf16.mxu0 0
        %1312 = vmatpush1.bf16.msra.mxu0 %v1277
        %1313 = vmatprep.subr.bf16.mxu0 0
        %1314 = vmatpush1.bf16.msra.mxu0 %v1278
        %1315 = vmatprep.subr.bf16.mxu0 0
        %1316 = vmatpush1.bf16.msra.mxu0 %v1279
        %1317 = vmatprep.subr.bf16.mxu0 0
        %1318 = vmatpush1.bf16.msra.mxu0 %v1280
        %1319 = vmatprep.subr.bf16.mxu0 0
        %1320 = vmatpush1.bf16.msra.mxu0 %v1281
        %1321 = vmatprep.subr.bf16.mxu0 0
        %1322 = vmatpush1.bf16.msra.mxu0 %v1282
        %1323 = vmatprep.subr.bf16.mxu0 0
        %1324 = vmatpush1.bf16.msra.mxu0 %v1283
        %1325 = vmatprep.subr.bf16.mxu0 0
        %1326 = vmatpush1.bf16.msra.mxu0 %v1284
        %1327 = vmatprep.subr.bf16.mxu0 0
        %1328 = vmatpush1.bf16.msra.mxu0 %v1285
        %1329 = vmatprep.subr.bf16.mxu0 0
        %1330 = vmatpush1.bf16.msra.mxu0 %v1286
        %1331 = vmatprep.subr.bf16.mxu0 0
        %1332 = vmatpush1.bf16.msra.mxu0 %v1287
        %1333 = vmatprep.subr.bf16.mxu0 0
        %1334 = vmatpush1.bf16.msra.mxu0 %v1288
        %1335 = vmatprep.subr.bf16.mxu0 0
        %1336 = vmatpush1.bf16.msra.mxu0 %v1289
        %1337 = vmatprep.subr.bf16.mxu0 0
        %1338 = vmatpush1.bf16.msra.mxu0 %v1290
        %1339 = vmatprep.mubr.bf16.mxu0 %v1171
        %1340 = vmatmul.mubr.bf16.gmra.mrb[0].mxu0 %v1170
        %v1341 = vpop.f32.mrb[0].mxu0
        %v1342 = vadd.f32 %v1209, %v1341
        %v1343 = vpop.f32.mrb[0].mxu0
        %v1344 = vpop.f32.mrb[0].mxu0
        %v1345 = vadd.f32 %v1209, %v1344
        %v1346 = vpop.f32.mrb[0].mxu0
        %1347 = vdwg.mxu0
        %v1348 = vpack.c.bf16 %v1140, %v1138
        %v1349 = vpack.c.bf16 %v1141, %v1139
        %v1350 = vld [vmem:[%s999] sm:$0xf]
        %v1351 = vld [vmem:[%s999 + $0x4] sm:$0xf]
        %v1352 = vld [vmem:[%s999 + $0x8] sm:$0xf]
        %v1353 = vld [vmem:[%s999 + $0xc] sm:$0xf]
        %v1354 = vld [vmem:[%s999 + $0x10] sm:$0xf]
        %v1355 = vld [vmem:[%s999 + $0x14] sm:$0xf]
        %v1356 = vld [vmem:[%s999 + $0x18] sm:$0xf]
        %v1357 = vld [vmem:[%s999 + $0x1c] sm:$0xf]
        %v1358 = vld [vmem:[%s999 + $0x20] sm:$0xf]
        %v1359 = vld [vmem:[%s999 + $0x24] sm:$0xf]
        %v1360 = vld [vmem:[%s999 + $0x28] sm:$0xf]
        %v1361 = vld [vmem:[%s999 + $0x2c] sm:$0xf]
        %v1362 = vld [vmem:[%s999 + $0x30] sm:$0xf]
        %v1363 = vld [vmem:[%s999 + $0x34] sm:$0xf]
        %v1364 = vld [vmem:[%s999 + $0x38] sm:$0xf]
        %v1365 = vld [vmem:[%s999 + $0x3c] sm:$0xf]
        %v1366 = vld [vmem:[%s999 + $0x40] sm:$0xf]
        %v1367 = vld [vmem:[%s999 + $0x44] sm:$0xf]
        %v1368 = vld [vmem:[%s999 + $0x48] sm:$0xf]
        %v1369 = vld [vmem:[%s999 + $0x4c] sm:$0xf]
        %v1370 = vld [vmem:[%s999 + $0x50] sm:$0xf]
        %v1371 = vld [vmem:[%s999 + $0x54] sm:$0xf]
        %v1372 = vld [vmem:[%s999 + $0x58] sm:$0xf]
        %v1373 = vld [vmem:[%s999 + $0x5c] sm:$0xf]
        %v1374 = vld [vmem:[%s999 + $0x60] sm:$0xf]
        %v1375 = vld [vmem:[%s999 + $0x64] sm:$0xf]
        %v1376 = vld [vmem:[%s999 + $0x68] sm:$0xf]
        %v1377 = vld [vmem:[%s999 + $0x6c] sm:$0xf]
        %v1378 = vld [vmem:[%s999 + $0x70] sm:$0xf]
        %v1379 = vld [vmem:[%s999 + $0x74] sm:$0xf]
        %v1380 = vld [vmem:[%s999 + $0x78] sm:$0xf]
        %v1381 = vld [vmem:[%s999 + $0x7c] sm:$0xf]
        %v1382 = vld [vmem:[%s1115] sm:$0x1]
        %v1384 = vlaneseq
        %v1385 = vshrl.u32 %v1384, 7
        %v1386 = vsub.s32 0, %v1385
        %v1387 = vrot.slane %v1382, %v1386
        %v1421 = vunpack.c.l.b16 %v1350
        %v1422 = vunpack.c.l.b16 %v1351
        %v1423 = vunpack.c.l.b16 %v1352
        %v1424 = vunpack.c.l.b16 %v1353
        %v1425 = vunpack.c.l.b16 %v1354
        %v1426 = vunpack.c.l.b16 %v1355
        %v1427 = vunpack.c.l.b16 %v1356
        %v1428 = vunpack.c.l.b16 %v1357
        %v1429 = vunpack.c.l.b16 %v1358
        %v1430 = vunpack.c.l.b16 %v1359
        %v1431 = vunpack.c.l.b16 %v1360
        %v1432 = vunpack.c.l.b16 %v1361
        %v1433 = vunpack.c.l.b16 %v1362
        %v1434 = vunpack.c.l.b16 %v1363
        %v1435 = vunpack.c.l.b16 %v1364
        %v1436 = vunpack.c.l.b16 %v1365
        %v1437 = vunpack.c.l.b16 %v1366
        %v1438 = vunpack.c.l.b16 %v1367
        %v1439 = vunpack.c.l.b16 %v1368
        %v1440 = vunpack.c.l.b16 %v1369
        %v1441 = vunpack.c.l.b16 %v1370
        %v1442 = vunpack.c.l.b16 %v1371
        %v1443 = vunpack.c.l.b16 %v1372
        %v1444 = vunpack.c.l.b16 %v1373
        %v1445 = vunpack.c.l.b16 %v1374
        %v1446 = vunpack.c.l.b16 %v1375
        %v1447 = vunpack.c.l.b16 %v1376
        %v1448 = vunpack.c.l.b16 %v1377
        %v1449 = vunpack.c.l.b16 %v1378
        %v1450 = vunpack.c.l.b16 %v1379
        %v1451 = vunpack.c.l.b16 %v1380
        %v1452 = vunpack.c.l.b16 %v1381
        %v1453 = vpack.c.b16 %v1422, %v1421
        %v1454 = vpack.c.b16 %v1424, %v1423
        %v1455 = vpack.c.b16 %v1426, %v1425
        %v1456 = vpack.c.b16 %v1428, %v1427
        %v1457 = vpack.c.b16 %v1430, %v1429
        %v1458 = vpack.c.b16 %v1432, %v1431
        %v1459 = vpack.c.b16 %v1434, %v1433
        %v1460 = vpack.c.b16 %v1436, %v1435
        %v1461 = vpack.c.b16 %v1438, %v1437
        %v1462 = vpack.c.b16 %v1440, %v1439
        %v1463 = vpack.c.b16 %v1442, %v1441
        %v1464 = vpack.c.b16 %v1444, %v1443
        %v1465 = vpack.c.b16 %v1446, %v1445
        %v1466 = vpack.c.b16 %v1448, %v1447
        %v1467 = vpack.c.b16 %v1450, %v1449
        %v1468 = vpack.c.b16 %v1452, %v1451
        %1485 = vmatprep.subr.bf16.mxu0 0
        %1486 = vmatpush1.bf16.msra.mxu0 %v1453
        %1487 = vmatprep.subr.bf16.mxu0 0
        %1488 = vmatpush1.bf16.msra.mxu0 %v1454
        %1489 = vmatprep.subr.bf16.mxu0 0
        %1490 = vmatpush1.bf16.msra.mxu0 %v1455
        %1491 = vmatprep.subr.bf16.mxu0 0
        %1492 = vmatpush1.bf16.msra.mxu0 %v1456
        %1493 = vmatprep.subr.bf16.mxu0 0
        %1494 = vmatpush1.bf16.msra.mxu0 %v1457
        %1495 = vmatprep.subr.bf16.mxu0 0
        %1496 = vmatpush1.bf16.msra.mxu0 %v1458
        %1497 = vmatprep.subr.bf16.mxu0 0
        %1498 = vmatpush1.bf16.msra.mxu0 %v1459
        %1499 = vmatprep.subr.bf16.mxu0 0
        %1500 = vmatpush1.bf16.msra.mxu0 %v1460
        %1501 = vmatprep.subr.bf16.mxu0 0
        %1502 = vmatpush1.bf16.msra.mxu0 %v1461
        %1503 = vmatprep.subr.bf16.mxu0 0
        %1504 = vmatpush1.bf16.msra.mxu0 %v1462
        %1505 = vmatprep.subr.bf16.mxu0 0
        %1506 = vmatpush1.bf16.msra.mxu0 %v1463
        %1507 = vmatprep.subr.bf16.mxu0 0
        %1508 = vmatpush1.bf16.msra.mxu0 %v1464
        %1509 = vmatprep.subr.bf16.mxu0 0
        %1510 = vmatpush1.bf16.msra.mxu0 %v1465
        %1511 = vmatprep.subr.bf16.mxu0 0
        %1512 = vmatpush1.bf16.msra.mxu0 %v1466
        %1513 = vmatprep.subr.bf16.mxu0 0
        %1514 = vmatpush1.bf16.msra.mxu0 %v1467
        %1515 = vmatprep.subr.bf16.mxu0 0
        %1516 = vmatpush1.bf16.msra.mxu0 %v1468
        %1517 = vmatprep.mubr.bf16.mxu0 %v1349
        %1518 = vmatmul.mubr.bf16.gmra.mrb[0].mxu0 %v1348
        %v1519 = vpop.f32.mrb[0].mxu0
        %v1520 = vadd.f32 %v1387, %v1519
        %v1521 = vpop.f32.mrb[0].mxu0
        %v1522 = vpop.f32.mrb[0].mxu0
        %v1523 = vadd.f32 %v1387, %v1522
        %v1524 = vpop.f32.mrb[0].mxu0
        %1525 = vdwg.mxu0
        %v1526 = vpack.c.bf16 %v1144, %v1142
        %v1527 = vpack.c.bf16 %v1145, %v1143
        %v1528 = vld [vmem:[%s1006] sm:$0xf]
        %v1529 = vld [vmem:[%s1006 + $0x4] sm:$0xf]
        %v1530 = vld [vmem:[%s1006 + $0x8] sm:$0xf]
        %v1531 = vld [vmem:[%s1006 + $0xc] sm:$0xf]
        %v1532 = vld [vmem:[%s1006 + $0x10] sm:$0xf]
        %v1533 = vld [vmem:[%s1006 + $0x14] sm:$0xf]
        %v1534 = vld [vmem:[%s1006 + $0x18] sm:$0xf]
        %v1535 = vld [vmem:[%s1006 + $0x1c] sm:$0xf]
        %v1536 = vld [vmem:[%s1006 + $0x20] sm:$0xf]
        %v1537 = vld [vmem:[%s1006 + $0x24] sm:$0xf]
        %v1538 = vld [vmem:[%s1006 + $0x28] sm:$0xf]
        %v1539 = vld [vmem:[%s1006 + $0x2c] sm:$0xf]
        %v1540 = vld [vmem:[%s1006 + $0x30] sm:$0xf]
        %v1541 = vld [vmem:[%s1006 + $0x34] sm:$0xf]
        %v1542 = vld [vmem:[%s1006 + $0x38] sm:$0xf]
        %v1543 = vld [vmem:[%s1006 + $0x3c] sm:$0xf]
        %v1544 = vld [vmem:[%s1006 + $0x40] sm:$0xf]
        %v1545 = vld [vmem:[%s1006 + $0x44] sm:$0xf]
        %v1546 = vld [vmem:[%s1006 + $0x48] sm:$0xf]
        %v1547 = vld [vmem:[%s1006 + $0x4c] sm:$0xf]
        %v1548 = vld [vmem:[%s1006 + $0x50] sm:$0xf]
        %v1549 = vld [vmem:[%s1006 + $0x54] sm:$0xf]
        %v1550 = vld [vmem:[%s1006 + $0x58] sm:$0xf]
        %v1551 = vld [vmem:[%s1006 + $0x5c] sm:$0xf]
        %v1552 = vld [vmem:[%s1006 + $0x60] sm:$0xf]
        %v1553 = vld [vmem:[%s1006 + $0x64] sm:$0xf]
        %v1554 = vld [vmem:[%s1006 + $0x68] sm:$0xf]
        %v1555 = vld [vmem:[%s1006 + $0x6c] sm:$0xf]
        %v1556 = vld [vmem:[%s1006 + $0x70] sm:$0xf]
        %v1557 = vld [vmem:[%s1006 + $0x74] sm:$0xf]
        %v1558 = vld [vmem:[%s1006 + $0x78] sm:$0xf]
        %v1559 = vld [vmem:[%s1006 + $0x7c] sm:$0xf]
        %v1560 = vld [vmem:[%s1118] sm:$0x1]
        %v1562 = vlaneseq
        %v1563 = vshrl.u32 %v1562, 7
        %v1564 = vsub.s32 0, %v1563
        %v1565 = vrot.slane %v1560, %v1564
        %v1599 = vunpack.c.l.b16 %v1528
        %v1600 = vunpack.c.l.b16 %v1529
        %v1601 = vunpack.c.l.b16 %v1530
        %v1602 = vunpack.c.l.b16 %v1531
        %v1603 = vunpack.c.l.b16 %v1532
        %v1604 = vunpack.c.l.b16 %v1533
        %v1605 = vunpack.c.l.b16 %v1534
        %v1606 = vunpack.c.l.b16 %v1535
        %v1607 = vunpack.c.l.b16 %v1536
        %v1608 = vunpack.c.l.b16 %v1537
        %v1609 = vunpack.c.l.b16 %v1538
        %v1610 = vunpack.c.l.b16 %v1539
        %v1611 = vunpack.c.l.b16 %v1540
        %v1612 = vunpack.c.l.b16 %v1541
        %v1613 = vunpack.c.l.b16 %v1542
        %v1614 = vunpack.c.l.b16 %v1543
        %v1615 = vunpack.c.l.b16 %v1544
        %v1616 = vunpack.c.l.b16 %v1545
        %v1617 = vunpack.c.l.b16 %v1546
        %v1618 = vunpack.c.l.b16 %v1547
        %v1619 = vunpack.c.l.b16 %v1548
        %v1620 = vunpack.c.l.b16 %v1549
        %v1621 = vunpack.c.l.b16 %v1550
        %v1622 = vunpack.c.l.b16 %v1551
        %v1623 = vunpack.c.l.b16 %v1552
        %v1624 = vunpack.c.l.b16 %v1553
        %v1625 = vunpack.c.l.b16 %v1554
        %v1626 = vunpack.c.l.b16 %v1555
        %v1627 = vunpack.c.l.b16 %v1556
        %v1628 = vunpack.c.l.b16 %v1557
        %v1629 = vunpack.c.l.b16 %v1558
        %v1630 = vunpack.c.l.b16 %v1559
        %v1631 = vpack.c.b16 %v1600, %v1599
        %v1632 = vpack.c.b16 %v1602, %v1601
        %v1633 = vpack.c.b16 %v1604, %v1603
        %v1634 = vpack.c.b16 %v1606, %v1605
        %v1635 = vpack.c.b16 %v1608, %v1607
        %v1636 = vpack.c.b16 %v1610, %v1609
        %v1637 = vpack.c.b16 %v1612, %v1611
        %v1638 = vpack.c.b16 %v1614, %v1613
        %v1639 = vpack.c.b16 %v1616, %v1615
        %v1640 = vpack.c.b16 %v1618, %v1617
        %v1641 = vpack.c.b16 %v1620, %v1619
        %v1642 = vpack.c.b16 %v1622, %v1621
        %v1643 = vpack.c.b16 %v1624, %v1623
        %v1644 = vpack.c.b16 %v1626, %v1625
        %v1645 = vpack.c.b16 %v1628, %v1627
        %v1646 = vpack.c.b16 %v1630, %v1629
        %1663 = vmatprep.subr.bf16.mxu0 0
        %1664 = vmatpush1.bf16.msra.mxu0 %v1631
        %1665 = vmatprep.subr.bf16.mxu0 0
        %1666 = vmatpush1.bf16.msra.mxu0 %v1632
        %1667 = vmatprep.subr.bf16.mxu0 0
        %1668 = vmatpush1.bf16.msra.mxu0 %v1633
        %1669 = vmatprep.subr.bf16.mxu0 0
        %1670 = vmatpush1.bf16.msra.mxu0 %v1634
        %1671 = vmatprep.subr.bf16.mxu0 0
        %1672 = vmatpush1.bf16.msra.mxu0 %v1635
        %1673 = vmatprep.subr.bf16.mxu0 0
        %1674 = vmatpush1.bf16.msra.mxu0 %v1636
        %1675 = vmatprep.subr.bf16.mxu0 0
        %1676 = vmatpush1.bf16.msra.mxu0 %v1637
        %1677 = vmatprep.subr.bf16.mxu0 0
        %1678 = vmatpush1.bf16.msra.mxu0 %v1638
        %1679 = vmatprep.subr.bf16.mxu0 0
        %1680 = vmatpush1.bf16.msra.mxu0 %v1639
        %1681 = vmatprep.subr.bf16.mxu0 0
        %1682 = vmatpush1.bf16.msra.mxu0 %v1640
        %1683 = vmatprep.subr.bf16.mxu0 0
        %1684 = vmatpush1.bf16.msra.mxu0 %v1641
        %1685 = vmatprep.subr.bf16.mxu0 0
        %1686 = vmatpush1.bf16.msra.mxu0 %v1642
        %1687 = vmatprep.subr.bf16.mxu0 0
        %1688 = vmatpush1.bf16.msra.mxu0 %v1643
        %1689 = vmatprep.subr.bf16.mxu0 0
        %1690 = vmatpush1.bf16.msra.mxu0 %v1644
        %1691 = vmatprep.subr.bf16.mxu0 0
        %1692 = vmatpush1.bf16.msra.mxu0 %v1645
        %1693 = vmatprep.subr.bf16.mxu0 0
        %1694 = vmatpush1.bf16.msra.mxu0 %v1646
        %1695 = vmatprep.mubr.bf16.mxu0 %v1527
        %1696 = vmatmul.mubr.bf16.gmra.mrb[0].mxu0 %v1526
        %v1697 = vpop.f32.mrb[0].mxu0
        %v1698 = vadd.f32 %v1565, %v1697
        %v1699 = vpop.f32.mrb[0].mxu0
        %v1700 = vpop.f32.mrb[0].mxu0
        %v1701 = vadd.f32 %v1565, %v1700
        %v1702 = vpop.f32.mrb[0].mxu0
        %1703 = vdwg.mxu0
        %v1704 = vpack.c.bf16 %v1342, %v1342
        %v1705 = vpack.c.bf16 %v1345, %v1345
        %v1706 = vpack.c.bf16 %v1520, %v1520
        %v1707 = vpack.c.bf16 %v1523, %v1523
        %v1708 = vpack.c.bf16 %v1698, %v1698
        %v1709 = vpack.c.bf16 %v1701, %v1701
        %1710 = vmatprep.subr.bf16.mxu0 0
        %1711 = vmatpush1.bf16.xpose.msra.mxu0 %v1706
        %1712 = vmatprep.subr.bf16.mxu0 0
        %1713 = vmatpush1.bf16.xpose.msra.mxu0 0
        %1714 = vmatprep.subr.bf16.mxu0 0
        %1715 = vmatpush1.bf16.xpose.msra.mxu0 0
        %1716 = vmatprep.subr.bf16.mxu0 0
        %1717 = vmatpush1.bf16.xpose.msra.mxu0 0
        %1718 = vmatprep.subr.bf16.mxu0 0
        %1719 = vmatpush1.bf16.xpose.msra.mxu0 0
        %1720 = vmatprep.subr.bf16.mxu0 0
        %1721 = vmatpush1.bf16.xpose.msra.mxu0 0
        %1722 = vmatprep.subr.bf16.mxu0 0
        %1723 = vmatpush1.bf16.xpose.msra.mxu0 0
        %1724 = vmatprep.subr.bf16.mxu0 0
        %1725 = vmatpush1.bf16.xpose.msra.mxu0 0
        %1726 = vmatprep.subr.bf16.mxu0 0
        %1727 = vmatpush1.bf16.xpose.msra.mxu0 0
        %1728 = vmatprep.subr.bf16.mxu0 0
        %1729 = vmatpush1.bf16.xpose.msra.mxu0 0
        %1730 = vmatprep.subr.bf16.mxu0 0
        %1731 = vmatpush1.bf16.xpose.msra.mxu0 0
        %1732 = vmatprep.subr.bf16.mxu0 0
        %1733 = vmatpush1.bf16.xpose.msra.mxu0 0
        %1734 = vmatprep.subr.bf16.mxu0 0
        %1735 = vmatpush1.bf16.xpose.msra.mxu0 0
        %1736 = vmatprep.subr.bf16.mxu0 0
        %1737 = vmatpush1.bf16.xpose.msra.mxu0 0
        %1738 = vmatprep.subr.bf16.mxu0 0
        %1739 = vmatpush1.bf16.xpose.msra.mxu0 0
        %1740 = vmatprep.subr.bf16.mxu0 0
        %1741 = vmatpush1.bf16.xpose.msra.mxu0 0
        %1742 = vmatprep.mubr.bf16.mxu0 0
        %1743 = vmatmul.mubr.bf16.gmra.mrb[0].mxu0 %v1704
        %v1744 = vpop.f32.mrb[0].mxu0
        %v1745 = vadd.f32 0.0, %v1744
        %v1746 = vpop.f32.mrb[0].mxu0
        %v1747 = vpop.f32.mrb[0].mxu0
        %v1748 = vpop.f32.mrb[0].mxu0
        %1749 = vdwg.mxu0
        %1750 = vmatprep.subr.bf16.mxu0 0
        %1751 = vmatpush1.bf16.xpose.msra.mxu0 %v1707
        %1752 = vmatprep.subr.bf16.mxu0 0
        %1753 = vmatpush1.bf16.xpose.msra.mxu0 0
        %1754 = vmatprep.subr.bf16.mxu0 0
        %1755 = vmatpush1.bf16.xpose.msra.mxu0 0
        %1756 = vmatprep.subr.bf16.mxu0 0
        %1757 = vmatpush1.bf16.xpose.msra.mxu0 0
        %1758 = vmatprep.subr.bf16.mxu0 0
        %1759 = vmatpush1.bf16.xpose.msra.mxu0 0
        %1760 = vmatprep.subr.bf16.mxu0 0
        %1761 = vmatpush1.bf16.xpose.msra.mxu0 0
        %1762 = vmatprep.subr.bf16.mxu0 0
        %1763 = vmatpush1.bf16.xpose.msra.mxu0 0
        %1764 = vmatprep.subr.bf16.mxu0 0
        %1765 = vmatpush1.bf16.xpose.msra.mxu0 0
        %1766 = vmatprep.subr.bf16.mxu0 0
        %1767 = vmatpush1.bf16.xpose.msra.mxu0 0
        %1768 = vmatprep.subr.bf16.mxu0 0
        %1769 = vmatpush1.bf16.xpose.msra.mxu0 0
        %1770 = vmatprep.subr.bf16.mxu0 0
        %1771 = vmatpush1.bf16.xpose.msra.mxu0 0
        %1772 = vmatprep.subr.bf16.mxu0 0
        %1773 = vmatpush1.bf16.xpose.msra.mxu0 0
        %1774 = vmatprep.subr.bf16.mxu0 0
        %1775 = vmatpush1.bf16.xpose.msra.mxu0 0
        %1776 = vmatprep.subr.bf16.mxu0 0
        %1777 = vmatpush1.bf16.xpose.msra.mxu0 0
        %1778 = vmatprep.subr.bf16.mxu0 0
        %1779 = vmatpush1.bf16.xpose.msra.mxu0 0
        %1780 = vmatprep.subr.bf16.mxu0 0
        %1781 = vmatpush1.bf16.xpose.msra.mxu0 0
        %1782 = vmatprep.mubr.bf16.mxu0 0
        %1783 = vmatmul.mubr.bf16.gmra.mrb[0].mxu0 %v1705
        %v1784 = vpop.f32.mrb[0].mxu0
        %v1785 = vadd.f32 0.0, %v1784
        %v1786 = vpop.f32.mrb[0].mxu0
        %v1787 = vpop.f32.mrb[0].mxu0
        %v1788 = vpop.f32.mrb[0].mxu0
        %1789 = vdwg.mxu0
        %vm1790 = vcmask 64512
        %v1791 = vsel %vm1790, %v1745, -inf
        %1792 = vmax.xlane.f32.xlu0 %v1791
        %v1793 = vpop.xlane.xlu0 %1792
        %v1794 = vsel %vm1790, %v1785, -inf
        %1795 = vmax.xlane.f32.xlu0 %v1794
        %v1796 = vpop.xlane.xlu0 %1795
        %v1797 = vsub.f32 %v1745, %v1793
        %v1798 = vsub.f32 %v1785, %v1796
        %v1799 = vmul.f32 %v1797, 1.442695
        %v1800 = vpow.pop %v1799
        %v1801 = vmul.f32 %v1798, 1.442695
        %v1802 = vpow.pop %v1801
        %v1803 = vsel %vm1790, %v1800, 0.0
        %1804 = vadd.xlane.f32.xlu0 %v1803
        %v1805 = vpop.xlane.xlu0 %1804
        %v1806 = vsel %vm1790, %v1802, 0.0
        %1807 = vadd.xlane.f32.xlu0 %v1806
        %v1808 = vpop.xlane.xlu0 %1807
        %v1809 = vrcp.pop %v1805
        %v1810 = vrcp.pop %v1808
        %v1811 = vmul.f32 %v1800, %v1809
        %v1812 = vmul.f32 %v1802, %v1810
        %v1813 = vpack.c.bf16 %v1811, %v1811
        %v1814 = vpack.c.bf16 %v1812, %v1812
        %v1816 = vsel %vm1790, %v1813, 0
        %vm1818 = vcmask 1043456
        %v1820 = vsel %vm1818, %v1708, 0
        %1822 = vmatprep.subr.bf16.mxu0 0
        %1823 = vmatpush1.bf16.msra.mxu0 %v1820
        %1824 = vmatprep.subr.bf16.mxu0 0
        %1825 = vmatpush1.bf16.msra.mxu0 0
        %1826 = vmatprep.subr.bf16.mxu0 0
        %1827 = vmatpush1.bf16.msra.mxu0 0
        %1828 = vmatprep.subr.bf16.mxu0 0
        %1829 = vmatpush1.bf16.msra.mxu0 0
        %1830 = vmatprep.subr.bf16.mxu0 0
        %1831 = vmatpush1.bf16.msra.mxu0 0
        %1832 = vmatprep.subr.bf16.mxu0 0
        %1833 = vmatpush1.bf16.msra.mxu0 0
        %1834 = vmatprep.subr.bf16.mxu0 0
        %1835 = vmatpush1.bf16.msra.mxu0 0
        %1836 = vmatprep.subr.bf16.mxu0 0
        %1837 = vmatpush1.bf16.msra.mxu0 0
        %1838 = vmatprep.subr.bf16.mxu0 0
        %1839 = vmatpush1.bf16.msra.mxu0 0
        %1840 = vmatprep.subr.bf16.mxu0 0
        %1841 = vmatpush1.bf16.msra.mxu0 0
        %1842 = vmatprep.subr.bf16.mxu0 0
        %1843 = vmatpush1.bf16.msra.mxu0 0
        %1844 = vmatprep.subr.bf16.mxu0 0
        %1845 = vmatpush1.bf16.msra.mxu0 0
        %1846 = vmatprep.subr.bf16.mxu0 0
        %1847 = vmatpush1.bf16.msra.mxu0 0
        %1848 = vmatprep.subr.bf16.mxu0 0
        %1849 = vmatpush1.bf16.msra.mxu0 0
        %1850 = vmatprep.subr.bf16.mxu0 0
        %1851 = vmatpush1.bf16.msra.mxu0 0
        %1852 = vmatprep.subr.bf16.mxu0 0
        %1853 = vmatpush1.bf16.msra.mxu0 0
        %1854 = vmatprep.mubr.bf16.mxu0 0
        %1855 = vmatmul.mubr.bf16.gmra.mrb[0].mxu0 %v1816
        %v1856 = vpop.f32.mrb[0].mxu0
        %v1857 = vadd.f32 0.0, %v1856
        %v1858 = vpop.f32.mrb[0].mxu0
        %v1859 = vpop.f32.mrb[0].mxu0
        %v1860 = vpop.f32.mrb[0].mxu0
        %1861 = vdwg.mxu0
        %v1863 = vsel %vm1790, %v1814, 0
        %v1866 = vsel %vm1818, %v1709, 0
        %1868 = vmatprep.subr.bf16.mxu0 0
        %1869 = vmatpush1.bf16.msra.mxu0 %v1866
        %1870 = vmatprep.subr.bf16.mxu0 0
        %1871 = vmatpush1.bf16.msra.mxu0 0
        %1872 = vmatprep.subr.bf16.mxu0 0
        %1873 = vmatpush1.bf16.msra.mxu0 0
        %1874 = vmatprep.subr.bf16.mxu0 0
        %1875 = vmatpush1.bf16.msra.mxu0 0
        %1876 = vmatprep.subr.bf16.mxu0 0
        %1877 = vmatpush1.bf16.msra.mxu0 0
        %1878 = vmatprep.subr.bf16.mxu0 0
        %1879 = vmatpush1.bf16.msra.mxu0 0
        %1880 = vmatprep.subr.bf16.mxu0 0
        %1881 = vmatpush1.bf16.msra.mxu0 0
        %1882 = vmatprep.subr.bf16.mxu0 0
        %1883 = vmatpush1.bf16.msra.mxu0 0
        %1884 = vmatprep.subr.bf16.mxu0 0
        %1885 = vmatpush1.bf16.msra.mxu0 0
        %1886 = vmatprep.subr.bf16.mxu0 0
        %1887 = vmatpush1.bf16.msra.mxu0 0
        %1888 = vmatprep.subr.bf16.mxu0 0
        %1889 = vmatpush1.bf16.msra.mxu0 0
        %1890 = vmatprep.subr.bf16.mxu0 0
        %1891 = vmatpush1.bf16.msra.mxu0 0
        %1892 = vmatprep.subr.bf16.mxu0 0
        %1893 = vmatpush1.bf16.msra.mxu0 0
        %1894 = vmatprep.subr.bf16.mxu0 0
        %1895 = vmatpush1.bf16.msra.mxu0 0
        %1896 = vmatprep.subr.bf16.mxu0 0
        %1897 = vmatpush1.bf16.msra.mxu0 0
        %1898 = vmatprep.subr.bf16.mxu0 0
        %1899 = vmatpush1.bf16.msra.mxu0 0
        %1900 = vmatprep.mubr.bf16.mxu0 0
        %1901 = vmatmul.mubr.bf16.gmra.mrb[0].mxu0 %v1863
        %v1902 = vpop.f32.mrb[0].mxu0
        %v1903 = vadd.f32 0.0, %v1902
        %v1904 = vpop.f32.mrb[0].mxu0
        %v1905 = vpop.f32.mrb[0].mxu0
        %v1906 = vpop.f32.mrb[0].mxu0
        %1907 = vdwg.mxu0
        %v1908 = vld [vmem:[#allocation2] sm:$0xff]
        %v1909 = vld [vmem:[#allocation2 + $0x8] sm:$0xff]
        %v1910 = vld [vmem:[#allocation2 + $0x10] sm:$0xff]
        %v1911 = vld [vmem:[#allocation2 + $0x18] sm:$0xff]
        %v1912 = vpack.c.bf16 %v1903, %v1857
        %v1913 = vld [vmem:[%s1124] sm:$0xff]
        %v1914 = vld [vmem:[%s1124 + $0x8] sm:$0xff]
        %v1915 = vld [vmem:[%s1124 + $0x10] sm:$0xff]
        %v1916 = vld [vmem:[%s1124 + $0x18] sm:$0xff]
        %v1917 = vld [vmem:[%s1124 + $0x20] sm:$0xff]
        %v1918 = vld [vmem:[%s1124 + $0x28] sm:$0xff]
        %v1919 = vld [vmem:[%s1124 + $0x30] sm:$0xff]
        %v1920 = vld [vmem:[%s1124 + $0x38] sm:$0xff]
        %v1921 = vld [vmem:[%s1124 + $0x40] sm:$0xff]
        %v1922 = vld [vmem:[%s1124 + $0x48] sm:$0xff]
        %v1923 = vld [vmem:[%s1124 + $0x50] sm:$0xff]
        %v1924 = vld [vmem:[%s1124 + $0x58] sm:$0xff]
        %v1925 = vld [vmem:[%s1124 + $0x60] sm:$0xff]
        %v1926 = vld [vmem:[%s1124 + $0x68] sm:$0xff]
        %v1927 = vld [vmem:[%s1124 + $0x70] sm:$0xff]
        %v1928 = vld [vmem:[%s1124 + $0x78] sm:$0xff]
        %v1945 = vunpack.c.l.b16 %v1913
        %v1946 = vunpack.c.h.b16 %v1913
        %v1947 = vunpack.c.l.b16 %v1914
        %v1948 = vunpack.c.h.b16 %v1914
        %v1949 = vunpack.c.l.b16 %v1915
        %v1950 = vunpack.c.h.b16 %v1915
        %v1951 = vunpack.c.l.b16 %v1916
        %v1952 = vunpack.c.h.b16 %v1916
        %v1953 = vunpack.c.l.b16 %v1917
        %v1954 = vunpack.c.h.b16 %v1917
        %v1955 = vunpack.c.l.b16 %v1918
        %v1956 = vunpack.c.h.b16 %v1918
        %v1957 = vunpack.c.l.b16 %v1919
        %v1958 = vunpack.c.h.b16 %v1919
        %v1959 = vunpack.c.l.b16 %v1920
        %v1960 = vunpack.c.h.b16 %v1920
        %v1961 = vunpack.c.l.b16 %v1921
        %v1962 = vunpack.c.h.b16 %v1921
        %v1963 = vunpack.c.l.b16 %v1922
        %v1964 = vunpack.c.h.b16 %v1922
        %v1965 = vunpack.c.l.b16 %v1923
        %v1966 = vunpack.c.h.b16 %v1923
        %v1967 = vunpack.c.l.b16 %v1924
        %v1968 = vunpack.c.h.b16 %v1924
        %v1969 = vunpack.c.l.b16 %v1925
        %v1970 = vunpack.c.h.b16 %v1925
        %v1971 = vunpack.c.l.b16 %v1926
        %v1972 = vunpack.c.h.b16 %v1926
        %v1973 = vunpack.c.l.b16 %v1927
        %v1974 = vunpack.c.h.b16 %v1927
        %v1975 = vunpack.c.l.b16 %v1928
        %v1976 = vunpack.c.h.b16 %v1928
        %v1977 = vpack.c.b16 %v1947, %v1945
        %v1978 = vpack.c.b16 %v1948, %v1946
        %v1979 = vpack.c.b16 %v1951, %v1949
        %v1980 = vpack.c.b16 %v1952, %v1950
        %v1981 = vpack.c.b16 %v1955, %v1953
        %v1982 = vpack.c.b16 %v1956, %v1954
        %v1983 = vpack.c.b16 %v1959, %v1957
        %v1984 = vpack.c.b16 %v1960, %v1958
        %v1985 = vpack.c.b16 %v1963, %v1961
        %v1986 = vpack.c.b16 %v1964, %v1962
        %v1987 = vpack.c.b16 %v1967, %v1965
        %v1988 = vpack.c.b16 %v1968, %v1966
        %v1989 = vpack.c.b16 %v1971, %v1969
        %v1990 = vpack.c.b16 %v1972, %v1970
        %v1991 = vpack.c.b16 %v1975, %v1973
        %v1992 = vpack.c.b16 %v1976, %v1974
        %2009 = vmatprep.subr.bf16.mxu0 %v1978
        %2010 = vmatpush1.bf16.msra.mxu0 %v1977
        %2011 = vmatprep.subr.bf16.mxu0 %v1980
        %2012 = vmatpush1.bf16.msra.mxu0 %v1979
        %2013 = vmatprep.subr.bf16.mxu0 %v1982
        %2014 = vmatpush1.bf16.msra.mxu0 %v1981
        %2015 = vmatprep.subr.bf16.mxu0 %v1984
        %2016 = vmatpush1.bf16.msra.mxu0 %v1983
        %2017 = vmatprep.subr.bf16.mxu0 %v1986
        %2018 = vmatpush1.bf16.msra.mxu0 %v1985
        %2019 = vmatprep.subr.bf16.mxu0 %v1988
        %2020 = vmatpush1.bf16.msra.mxu0 %v1987
        %2021 = vmatprep.subr.bf16.mxu0 %v1990
        %2022 = vmatpush1.bf16.msra.mxu0 %v1989
        %2023 = vmatprep.subr.bf16.mxu0 %v1992
        %2024 = vmatpush1.bf16.msra.mxu0 %v1991
        %2025 = vmatprep.subr.bf16.mxu0 0
        %2026 = vmatpush1.bf16.msra.mxu0 0
        %2027 = vmatprep.subr.bf16.mxu0 0
        %2028 = vmatpush1.bf16.msra.mxu0 0
        %2029 = vmatprep.subr.bf16.mxu0 0
        %2030 = vmatpush1.bf16.msra.mxu0 0
        %2031 = vmatprep.subr.bf16.mxu0 0
        %2032 = vmatpush1.bf16.msra.mxu0 0
        %2033 = vmatprep.subr.bf16.mxu0 0
        %2034 = vmatpush1.bf16.msra.mxu0 0
        %2035 = vmatprep.subr.bf16.mxu0 0
        %2036 = vmatpush1.bf16.msra.mxu0 0
        %2037 = vmatprep.subr.bf16.mxu0 0
        %2038 = vmatpush1.bf16.msra.mxu0 0
        %2039 = vmatprep.subr.bf16.mxu0 0
        %2040 = vmatpush1.bf16.msra.mxu0 0
        %2041 = vmatprep.mubr.bf16.mxu0 0
        %2042 = vmatmul.mubr.bf16.gmra.mrb[0].mxu0 %v1912
        %v2043 = vpop.f32.mrb[0].mxu0
        %v2044 = vadd.f32 0.0, %v2043
        %v2045 = vpop.f32.mrb[0].mxu0
        %v2046 = vadd.f32 0.0, %v2045
        %v2047 = vpop.f32.mrb[0].mxu0
        %v2048 = vadd.f32 0.0, %v2047
        %v2049 = vpop.f32.mrb[0].mxu0
        %v2050 = vadd.f32 0.0, %v2049
        %2051 = vdwg.mxu0
        %v2052 = vadd.f32 %v1908, %v2044
        %v2053 = vadd.f32 %v1909, %v2046
        %v2054 = vadd.f32 %v1910, %v2048
        %v2055 = vadd.f32 %v1911, %v2050
        %2056 = vst [vmem:[#allocation2] sm:$0xff] %v2052
        %2057 = vst [vmem:[#allocation2 + $0x8] sm:$0xff] %v2053
        %2058 = vst [vmem:[#allocation2 + $0x10] sm:$0xff] %v2054
        %2059 = vst [vmem:[#allocation2 + $0x18] sm:$0xff] %v2055
        %p2060 = scmp.eq.s32.totalorder %s29, 1
        // Predicated region
        $region200: #{cross_attention.1} parent=182 // pred_check
          %p2061 = pneg %p2060
        $region201: #{cross_attention.1} parent=182 // pred_check_branch
          %2063 = sbr.rel (%p2061) target = $region203
        $region202: #{cross_attention.1} parent=182 // pred_region
          %v2064 = vld [vmem:[#allocation2] sm:$0xff]
          %v2065 = vld [vmem:[#allocation2 + $0x8] sm:$0xff]
          %v2066 = vld [vmem:[#allocation2 + $0x10] sm:$0xff]
          %v2067 = vld [vmem:[#allocation2 + $0x18] sm:$0xff]
          %v2068 = vadd.f32 %v2064, %v2065
          %2069 = vadd.xlane.f32.xlu0 %v2068
          %v2070 = vpop.xlane.xlu0 %2069
          %v2071 = vadd.f32 %v2066, %v2067
          %2072 = vadd.xlane.f32.xlu0 %v2071
          %v2073 = vpop.xlane.xlu0 %2072
          %v2074 = vrcp.pop 256.0
          %v2075 = vmul.f32 %v2070, %v2074
          %v2076 = vmul.f32 %v2073, %v2074
          %v2077 = vsub.f32 %v2064, %v2075
          %v2078 = vsub.f32 %v2065, %v2075
          %v2079 = vsub.f32 %v2066, %v2076
          %v2080 = vsub.f32 %v2067, %v2076
          %v2081 = vmul.f32 %v2077, %v2077
          %v2082 = vmul.f32 %v2078, %v2078
          %v2083 = vmul.f32 %v2079, %v2079
          %v2084 = vmul.f32 %v2080, %v2080
          %v2085 = vadd.f32 %v2081, %v2082
          %2086 = vadd.xlane.f32.xlu0 %v2085
          %v2087 = vpop.xlane.xlu0 %2086
          %v2088 = vadd.f32 %v2083, %v2084
          %2089 = vadd.xlane.f32.xlu0 %v2088
          %v2090 = vpop.xlane.xlu0 %2089
          %v2091 = vmul.f32 %v2087, %v2074
          %v2092 = vmul.f32 %v2090, %v2074
          %v2093 = vadd.f32 %v2091, 1e-05
          %v2094 = vadd.f32 %v2092, 1e-05
          %v2095 = vrsqrt.pop %v2093
          %v2096 = vrsqrt.pop %v2094
          %v2097 = vmul.f32 %v2077, %v2095
          %v2098 = vmul.f32 %v2078, %v2095
          %v2099 = vmul.f32 %v2079, %v2096
          %v2100 = vmul.f32 %v2080, %v2096
          %v2101 = vld [vmem:[%s11] sm:$0x3]
          %v2103 = vlaneseq
          %v2104 = vshrl.u32 %v2103, 7
          %v2105 = vsub.s32 0, %v2104
          %v2106 = vrot.slane %v2101, %v2105
          %v2107 = vlaneseq
          %v2108 = vshrl.u32 %v2107, 7
          %v2109 = vsub.s32 1, %v2108
          %v2110 = vrot.slane %v2101, %v2109
          %v2113 = vmul.f32 %v2097, %v2106
          %v2114 = vmul.f32 %v2098, %v2110
          %v2115 = vmul.f32 %v2099, %v2106
          %v2116 = vmul.f32 %v2100, %v2110
          %v2117 = vld [vmem:[%s12] sm:$0x3]
          %v2119 = vlaneseq
          %v2120 = vshrl.u32 %v2119, 7
          %v2121 = vsub.s32 0, %v2120
          %v2122 = vrot.slane %v2117, %v2121
          %v2123 = vlaneseq
          %v2124 = vshrl.u32 %v2123, 7
          %v2125 = vsub.s32 1, %v2124
          %v2126 = vrot.slane %v2117, %v2125
          %v2129 = vadd.f32 %v2113, %v2122
          %v2130 = vadd.f32 %v2114, %v2126
          %v2131 = vadd.f32 %v2115, %v2122
          %v2132 = vadd.f32 %v2116, %v2126
          %2133 = vst [vmem:[%s1131] sm:$0xff] %v2129
          %2134 = vst [vmem:[%s1131 + $0x8] sm:$0xff] %v2130
          %2135 = vst [vmem:[%s1131 + $0x10] sm:$0xff] %v2131
          %2136 = vst [vmem:[%s1131 + $0x18] sm:$0xff] %v2132
        $region203: #{cross_attention.1} parent=182 // pred_fallthru
          _
        %s2137 = smul.u32 2, %s28
        %p2138 = scmp.lt.s32.totalorder %s2137, 1
        %s2139 = scalar_select %p2138, %s2137, 1
        %s2140 = smul.addr %s2139, 2
        %s2141 = smul.addr %s2140, 8
        %s2142 = scalar_lea.vmem %s13, %s2141
        // Predicated region
        $region204: #{cross_attention.1} parent=182 // pred_check
          %p2143 = pneg %p377
        $region205: #{cross_attention.1} parent=182 // pred_check_branch
          %2145 = sbr.rel (%p2143) target = $region207
        $region206: #{cross_attention.1} parent=182 // pred_region
          %s2146 = smul.u32 2, %s28
        $region207: #{cross_attention.1} parent=182 // pred_fallthru
          _
        // Predicated region
        $region208: #{cross_attention.1} parent=182 // pred_check
          %p2147 = pneg %p377
        $region209: #{cross_attention.1} parent=182 // pred_check_branch
          %2149 = sbr.rel (%p2147) target = $region211
        $region210: #{cross_attention.1} parent=182 // pred_region
          %s2150 = smul.u32 2, %s28
          %p2151 = scmp.lt.s32.totalorder %s2150, 1
          %s2152 = scalar_select %p2151, %s2150, 1
          %s2153 = smul.addr %s2152, 2
          %s2154 = smul.addr %s2153, 8
          %s2155 = scalar_lea.vmem %s13, %s2154
        $region211: #{cross_attention.1} parent=182 // pred_fallthru
          _
      $region183: #{cross_attention.1} parent=5 // pred_fallthru
        _
      %p2156 = scmp.le.s32.totalorder 2, %s19
      // Predicated region
      $region212: #{cross_attention.1} parent=5 // pred_check
        %p2157 = pneg %p2156
      $region213: #{cross_attention.1} parent=5 // pred_check_branch
        %2159 = sbr.rel (%p2157) target = $region215
      $region214: #{cross_attention.1} parent=5 // pred_region
        %s2160 = ssub.s32 %s19, 2
      $region215: #{cross_attention.1} parent=5 // pred_fallthru
        _
    $region6: #{cross_attention.1} parent=1 // loop_footer
      %s23 = sadd.s32 1, %s19
    $region7: #{cross_attention.1} parent=1 // loop_footer_branch
      %18 = sbr.rel target = $region3
    $region8: #{cross_attention.1} parent=1 // loop_exit
      _

</llo_original>
